<compile_context>
chip_gen: v6e
topology: v6e:2x2x1
jax: 0.10.0
libtpu: 0.0.40
codegen_flags: <defaults>
</compile_context>

<pallas_src>
from functools import partial

import jax
import jax.numpy as jnp
from jax import lax
from jax.experimental import pallas as pl
from jax.experimental.pallas import tpu as pltpu

BN_EPS = 1e-5
MIB = 1024 * 1024


def _round_up(x, m):
    return ((x + m - 1) // m) * m


# ----------------------------- Pallas kernels --------------------------------
def conv_stats_kernel(w_ref, p_ref, conv_ref, stats_ref):
    # w_ref:     (Cp, Kp)        conv weight, channel-major (mxu_dtype)
    # p_ref:     (Kp, TM)        im2col patches tile in (K, M) layout (mxu_dtype)
    # conv_ref:  (Cp, TM)        conv output tile (conv_dtype)
    # stats_ref: (Cp, 256) f32   lanes [0:128) = per-channel sum (replicated),
    #                            lanes [128:256) = per-channel sum of squares.
    conv = jnp.dot(w_ref[...], p_ref[...], preferred_element_type=jnp.float32)
    conv_ref[...] = conv.astype(conv_ref.dtype)

    c = conv.shape[0]
    s = jnp.sum(conv, axis=1, keepdims=True)            # (Cp, 1)  XLU reduce
    ss = jnp.sum(conv * conv, axis=1, keepdims=True)    # (Cp, 1)
    # Full, lane-aligned 128-wide stores (no iota/select, no masked vst).
    stats_ref[:, 0:128] = jnp.broadcast_to(s, (c, 128))
    stats_ref[:, 128:256] = jnp.broadcast_to(ss, (c, 128))


def bn_silu_kernel(conv_ref, bn_ref, o_ref):
    # conv_ref: (Cp, TM2) conv_dtype
    # bn_ref:   (Cp, 128) f32, lane 0 = scale, lane 1 = shift
    y = conv_ref[...].astype(jnp.float32) * bn_ref[:, 0:1] + bn_ref[:, 1:2]
    o_ref[...] = (y * jax.nn.sigmoid(y)).astype(o_ref.dtype)


# ------------------------------ JAX glue -------------------------------------
def _im2col_km(x, k, s, p, dtype):
    """x: (N, C, H, W) -> patches (K, M); K ordered (c, ki, kj) to match the
    PyTorch Conv2d weight layout (Cout, Cin, k, k); M ordered (n, ho, wo)."""
    N, C, H, W = x.shape
    xp = jnp.pad(x.astype(dtype), ((0, 0), (0, 0), (p, p), (p, p)))
    Ho = (H + 2 * p - k) // s + 1
    Wo = (W + 2 * p - k) // s + 1
    cols = []
    for i in range(k):
        for j in range(k):
            cols.append(xp[:, :, i:i + s * Ho:s, j:j + s * Wo:s])   # (N,C,Ho,Wo)
    patches = jnp.stack(cols, axis=2)                  # (N, C, k*k, Ho, Wo)
    patches = patches.reshape(N, C * k * k, Ho, Wo)    # K idx = c*k*k + i*k + j
    patches = patches.transpose(1, 0, 2, 3)            # (K, N, Ho, Wo) major permute
    return patches.reshape(C * k * k, N * Ho * Wo), Ho, Wo


@partial(jax.jit, static_argnames=("k", "s", "p", "tm", "mxu_dtype"))
def conv_bn_silu(x, weight, bias, gamma, beta, *, k, s, p,
                 tm=None, mxu_dtype=jnp.bfloat16):
    """x: (N, Cin, H, W) NCHW.  weight: (Cout, Cin, k, k).  Returns NCHW f32.

    `bias` is accepted for API parity but is mathematically cancelled by the
    training-mode BatchNorm mean subtraction, so it is not applied.
    """
    del bias
    N, Cin, H, W = x.shape
    Cout = weight.shape[0]
    K = Cin * k * k

    mxu_bytes = jnp.dtype(mxu_dtype).itemsize
    conv_dtype = mxu_dtype                    # conv intermediate round-trip dtype
    conv_bytes = jnp.dtype(conv_dtype).itemsize

    # Per-generation VMEM budget (v5e/v6e: 128 MiB, v7x: 64 MiB per TC).
    try:
        vmem_cap = int(pltpu.get_tpu_info().vmem_capacity_bytes)
    except Exception:                         # conservative fallback (v7x-sized)
        vmem_cap = 64 * MIB
    budget = max(32 * MIB, min(int(0.75 * vmem_cap), 100 * MIB))

    patches_t, Ho, Wo = _im2col_km(x, k, s, p, mxu_dtype)          # (K, M)
    M = N * Ho * Wo

    Kp = _round_up(K, 128)
    Cp = _round_up(Cout, 128)

    # ---- pass-1 M tile: as big as the budget allows (auto-shrink for v7x) ----
    tm_req = tm if tm is not None else (2048 if budget >= 80 * MIB else 1024)
    tm_eff = max(128, min(_round_up(tm_req, 128), _round_up(M, 128)))

    def p1_need(t):
        return (2 * (Kp * t * mxu_bytes            # patches tile (double-buffered)
                     + Cp * t * conv_bytes         # conv tile
                     + Cp * 256 * 4)               # stats tile
                + 2 * Cp * Kp * mxu_bytes)         # resident weight block

    while tm_eff > 128 and p1_need(tm_eff) > budget:
        tm_eff -= 128

    Mp = _round_up(M, tm_eff)
    n_tiles = Mp // tm_eff

    patches_p = jnp.pad(patches_t, ((0, Kp - K), (0, Mp - M)))      # (Kp, Mp)
    w2 = jnp.pad(weight.reshape(Cout, K),
                 ((0, Cp - Cout), (0, Kp - K))).astype(mxu_dtype)   # (Cp, Kp)
    gamma_p = jnp.pad(gamma.astype(jnp.float32), (0, Cp - Cout))
    beta_p = jnp.pad(beta.astype(jnp.float32), (0, Cp - Cout))

    vmem1 = int(min(budget, max(32 * MIB, 4 * p1_need(tm_eff))))

    # ---------------- Pass 1: conv tiles + per-tile BN partials ----------------
    conv_out, stats = pl.pallas_call(
        conv_stats_kernel,
        out_shape=(jax.ShapeDtypeStruct((Cp, Mp), conv_dtype),
                   jax.ShapeDtypeStruct((Cp, n_tiles * 256), jnp.float32)),
        grid=(n_tiles,),
        in_specs=[
            pl.BlockSpec((Cp, Kp), lambda i: (0, 0)),        # weights (resident)
            pl.BlockSpec((Kp, tm_eff), lambda i: (0, i)),    # patches tile
        ],
        out_specs=(
            pl.BlockSpec((Cp, tm_eff), lambda i: (0, i)),    # conv tile
            pl.BlockSpec((Cp, 256), lambda i: (0, i)),       # per-tile partials
        ),
        compiler_params=pltpu.CompilerParams(
            dimension_semantics=("parallel",), vmem_limit_bytes=vmem1),
        cost_estimate=pl.CostEstimate(
            flops=2 * Cp * Kp * Mp,
            transcendentals=0,
            bytes_accessed=(Kp * Mp * mxu_bytes + Cp * Kp * mxu_bytes
                            + Cp * Mp * conv_bytes + Cp * n_tiles * 256 * 4)),
    )(w2, patches_p)

    # -------- Tiny (Cp,)-sized BN reduction + affine fold (plain JAX) ----------
    # TODO(synk): switch to a shifted two-moment accumulation if E[x^2]-E[x]^2
    # cancellation ever becomes an issue (very large M / large activation mean).
    st = stats.reshape(Cp, n_tiles, 2, 128)
    tot = jnp.sum(st[:, :, 0, 0], axis=1)                 # sum_x    (Cp,)
    tot_sq = jnp.sum(st[:, :, 1, 0], axis=1)              # sum_x^2  (Cp,)
    mean = tot / M                                        # padded cols are zero
    var = jnp.maximum(tot_sq / M - mean * mean, 0.0)      # biased var (PyTorch)
    inv = lax.rsqrt(var + BN_EPS)
    scale = gamma_p * inv
    shift = beta_p - mean * scale
    bn = jnp.pad(jnp.stack([scale, shift], axis=1), ((0, 0), (0, 126)))  # (Cp,128)

    # ------- Pass 2: BN + SiLU; HBM-bound, so decoupled (larger) M tile --------
    def p2_need(t):
        return 2 * Cp * t * (conv_bytes + 4) + 2 * Cp * 128 * 4

    tm2 = 128
    for j in range(min(Mp // 128, 32), 0, -1):            # cap at 4096 lanes
        t = 128 * j
        if Mp % t == 0 and p2_need(t) <= budget:
            tm2 = t
            break
    n_tiles2 = Mp // tm2
    vmem2 = int(min(budget, max(32 * MIB, 4 * p2_need(tm2))))

    out_cm = pl.pallas_call(
        bn_silu_kernel,
        out_shape=jax.ShapeDtypeStruct((Cp, Mp), jnp.float32),
        grid=(n_tiles2,),
        in_specs=[
            pl.BlockSpec((Cp, tm2), lambda i: (0, i)),      # conv tile
            pl.BlockSpec((Cp, 128), lambda i: (0, 0)),      # scale/shift (resident)
        ],
        out_specs=pl.BlockSpec((Cp, tm2), lambda i: (0, i)),
        compiler_params=pltpu.CompilerParams(
            dimension_semantics=("parallel",), vmem_limit_bytes=vmem2),
        cost_estimate=pl.CostEstimate(
            flops=4 * Cp * Mp,
            transcendentals=Cp * Mp,
            bytes_accessed=Cp * Mp * (conv_bytes + 4) + Cp * 128 * 4),
    )(conv_out, bn)

    # (Cp, Mp) -> (Cout, M) -> (Cout, N, Ho, Wo) -> NCHW.  Only a leading-axis
    # permute over contiguous Ho*Wo chunks remains (free when N == 1).
    out = out_cm[:Cout, :M].reshape(Cout, N, Ho, Wo)
    return out.transpose(1, 0, 2, 3)


# ----------------------------- reference (plain JAX) --------------------------
def conv_bn_silu_ref(x, weight, bias, gamma, beta, *, k, s, p):
    conv = lax.conv_general_dilated(
        x, weight, window_strides=(s, s), padding=[(p, p), (p, p)],
        dimension_numbers=("NCHW", "OIHW", "NCHW"))
    conv = conv + bias.reshape(1, -1, 1, 1)
    mean = jnp.mean(conv, axis=(0, 2, 3), keepdims=True)
    var = jnp.mean((conv - mean) ** 2, axis=(0, 2, 3), keepdims=True)
    xhat = (conv - mean) * lax.rsqrt(var + BN_EPS)
    y = xhat * gamma.reshape(1, -1, 1, 1) + beta.reshape(1, -1, 1, 1)
    return y * jax.nn.sigmoid(y)


# ----------------------------------- main -------------------------------------
if __name__ == "__main__":
    ch_in, ch_out, k, s, p = 4, 8, 3, 1, 1
    N, H, W = 2, 16, 16

    key = jax.random.PRNGKey(0)
    kx, kw, kb, kg, kbeta = jax.random.split(key, 5)

    x = jax.random.normal(kx, (N, ch_in, H, W), dtype=jnp.float32)
    weight = 0.1 * jax.random.normal(kw, (ch_out, ch_in, k, k), dtype=jnp.float32)
    bias = 0.1 * jax.random.normal(kb, (ch_out,), dtype=jnp.float32)
    gamma = 1.0 + 0.1 * jax.random.normal(kg, (ch_out,), dtype=jnp.float32)
    beta = 0.1 * jax.random.normal(kbeta, (ch_out,), dtype=jnp.float32)

    ref = conv_bn_silu_ref(x, weight, bias, gamma, beta, k=k, s=s, p=p)

    # Default fast path: bf16 MXU + bf16 conv intermediate, auto tiling.
    out_def = conv_bn_silu(x, weight, bias, gamma, beta, k=k, s=s, p=p)
    out_def = jax.block_until_ready(out_def)
    assert out_def.shape == (N, ch_out, H, W)
    assert bool(jnp.all(jnp.isfinite(out_def)))
    assert jnp.allclose(out_def, ref, atol=2e-1, rtol=1e-1), float(
        jnp.max(jnp.abs(out_def - ref)))

    # f32 MXU path (tight tolerance) — tm=256 so pass 1 runs a real 2-tile grid.
    out_f32 = conv_bn_silu(x, weight, bias, gamma, beta, k=k, s=s, p=p,
                           tm=256, mxu_dtype=jnp.float32)
    out_f32 = jax.block_until_ready(out_f32)
    assert out_f32.shape == (N, ch_out, H, W)
    assert jnp.allclose(out_f32, ref, atol=1e-4, rtol=1e-4), float(
        jnp.max(jnp.abs(out_f32 - ref)))

    # bf16 MXU path with an explicit multi-tile grid — loose tolerance.
    out_bf16 = conv_bn_silu(x, weight, bias, gamma, beta, k=k, s=s, p=p,
                            tm=256, mxu_dtype=jnp.bfloat16)
    out_bf16 = jax.block_until_ready(out_bf16)
    assert out_bf16.shape == (N, ch_out, H, W)
    assert bool(jnp.all(jnp.isfinite(out_bf16)))
    assert jnp.allclose(out_bf16, ref, atol=2e-1, rtol=1e-1), float(
        jnp.max(jnp.abs(out_bf16 - ref)))

    print("KERNEL_OK")
</pallas_src>

<mosaic_0001>
module attributes {stable_mosaic.version = 11 : i64} {
  func.func @conv_stats_kernel(%arg0: i32, %arg1: memref<128x128xbf16, #tpu.memory_space<vmem>>, %arg2: memref<128x512xbf16, #tpu.memory_space<vmem>>, %arg3: memref<128x512xbf16, #tpu.memory_space<vmem>>, %arg4: memref<128x256xf32, #tpu.memory_space<vmem>>) attributes {dimension_semantics = [#tpu.dimension_semantics<parallel>], iteration_bounds = array<i64: 1>, scalar_prefetch = 0 : i64, scratch_operands = 0 : i64, tpu.core_type = #tpu.core_type<tc>, window_params = [{pipeline_mode = #tpu.pipeline_mode<synchronous>, transform_indices = @transform_0, window_bounds = array<i64: 128, 128>}, {transform_indices = @transform_1, window_bounds = array<i64: 128, 512>}, {transform_indices = @transform_2, window_bounds = array<i64: 128, 512>}, {transform_indices = @transform_3, window_bounds = array<i64: 128, 256>}]} {
    %c0 = arith.constant 0 : index
    %c0_0 = arith.constant 0 : index
    %0 = vector.load %arg1[%c0, %c0_0] : memref<128x128xbf16, #tpu.memory_space<vmem>>, vector<128x128xbf16>
    %c0_1 = arith.constant 0 : index
    %c0_2 = arith.constant 0 : index
    %1 = vector.load %arg2[%c0_1, %c0_2] : memref<128x512xbf16, #tpu.memory_space<vmem>>, vector<128x512xbf16>
    %cst = arith.constant dense<0.000000e+00> : vector<128x512xf32>
    %2 = tpu.matmul %0, %1, %cst {dimension_numbers = #tpu.dot_dimension_numbers<[1], [0], [0], [1], [0, 0, 1, 1], [], []>} : vector<128x128xbf16>, vector<128x512xbf16>, vector<128x512xf32> -> vector<128x512xf32>
    %3 = arith.truncf %2 : vector<128x512xf32> to vector<128x512xbf16>
    %c0_3 = arith.constant 0 : index
    %c0_4 = arith.constant 0 : index
    %4 = vector.load %arg3[%c0_3, %c0_4] : memref<128x512xbf16, #tpu.memory_space<vmem>>, vector<128x512xbf16>
    tpu.vector_store %arg3[%c0_3, %c0_4], %3 {strides = array<i32>} : memref<128x512xbf16, #tpu.memory_space<vmem>>, vector<128x512xbf16>,
    %cst_5 = arith.constant dense<0.000000e+00> : vector<128xf32>
    %5 = vector.multi_reduction <add>, %2, %cst_5 [1] : vector<128x512xf32> to vector<128xf32>
    %6 = vector.shape_cast %5 : vector<128xf32> to vector<128x1xf32>
    %7 = arith.mulf %2, %2 : vector<128x512xf32>
    %cst_6 = arith.constant dense<0.000000e+00> : vector<128xf32>
    %8 = vector.multi_reduction <add>, %7, %cst_6 [1] : vector<128x512xf32> to vector<128xf32>
    %9 = vector.shape_cast %8 : vector<128xf32> to vector<128x1xf32>
    %10 = vector.shape_cast %6 : vector<128x1xf32> to vector<128x1xf32>
    %11 = vector.broadcast %10 : vector<128x1xf32> to vector<128x128xf32>
    %c0_7 = arith.constant 0 : index
    %c0_8 = arith.constant 0 : index
    %12 = vector.load %arg4[%c0_7, %c0_8] : memref<128x256xf32, #tpu.memory_space<vmem>>, vector<128x128xf32>
    tpu.vector_store %arg4[%c0_7, %c0_8], %11 {strides = array<i32>} : memref<128x256xf32, #tpu.memory_space<vmem>>, vector<128x128xf32>,
    %13 = vector.shape_cast %9 : vector<128x1xf32> to vector<128x1xf32>
    %14 = vector.broadcast %13 : vector<128x1xf32> to vector<128x128xf32>
    %c0_9 = arith.constant 0 : index
    %c128 = arith.constant 128 : index
    %15 = vector.load %arg4[%c0_9, %c128] : memref<128x256xf32, #tpu.memory_space<vmem>>, vector<128x128xf32>
    tpu.vector_store %arg4[%c0_9, %c128], %14 {strides = array<i32>} : memref<128x256xf32, #tpu.memory_space<vmem>>, vector<128x128xf32>,
    return
  }
  func.func @transform_0(%arg0: i32) -> (i32, i32) {
    %c0_i32 = arith.constant 0 : i32
    %c0_i32_0 = arith.constant 0 : i32
    %c0_i32_1 = arith.constant 0 : i32
    return %c0_i32, %c0_i32_0 : i32, i32
  }
  func.func @transform_1(%arg0: i32) -> (i32, i32) {
    %c0_i32 = arith.constant 0 : i32
    %c0_i32_0 = arith.constant 0 : i32
    return %c0_i32, %arg0 : i32, i32
  }
  func.func @transform_2(%arg0: i32) -> (i32, i32) {
    %c0_i32 = arith.constant 0 : i32
    %c0_i32_0 = arith.constant 0 : i32
    return %c0_i32, %arg0 : i32, i32
  }
  func.func @transform_3(%arg0: i32) -> (i32, i32) {
    %c0_i32 = arith.constant 0 : i32
    %c0_i32_0 = arith.constant 0 : i32
    return %c0_i32, %arg0 : i32, i32
  }
}

module attributes {stable_mosaic.version = 11 : i64} {
  func.func @bn_silu_kernel(%arg0: i32, %arg1: memref<128x512xbf16, #tpu.memory_space<vmem>>, %arg2: memref<128x128xf32, #tpu.memory_space<vmem>>, %arg3: memref<128x512xf32, #tpu.memory_space<vmem>>) attributes {dimension_semantics = [#tpu.dimension_semantics<parallel>], iteration_bounds = array<i64: 1>, scalar_prefetch = 0 : i64, scratch_operands = 0 : i64, tpu.core_type = #tpu.core_type<tc>, window_params = [{transform_indices = @transform_0, window_bounds = array<i64: 128, 512>}, {pipeline_mode = #tpu.pipeline_mode<synchronous>, transform_indices = @transform_1, window_bounds = array<i64: 128, 128>}, {transform_indices = @transform_2, window_bounds = array<i64: 128, 512>}]} {
    %c0 = arith.constant 0 : index
    %c0_0 = arith.constant 0 : index
    %0 = vector.load %arg1[%c0, %c0_0] : memref<128x512xbf16, #tpu.memory_space<vmem>>, vector<128x512xbf16>
    %1 = arith.extf %0 : vector<128x512xbf16> to vector<128x512xf32>
    %c0_1 = arith.constant 0 : index
    %c0_2 = arith.constant 0 : index
    %2 = vector.load %arg2[%c0_1, %c0_2] : memref<128x128xf32, #tpu.memory_space<vmem>>, vector<128x1xf32>
    %3 = vector.broadcast %2 : vector<128x1xf32> to vector<128x512xf32>
    %4 = arith.mulf %1, %3 : vector<128x512xf32>
    %c0_3 = arith.constant 0 : index
    %c1 = arith.constant 1 : index
    %5 = vector.load %arg2[%c0_3, %c1] : memref<128x128xf32, #tpu.memory_space<vmem>>, vector<128x1xf32>
    %6 = vector.broadcast %5 : vector<128x1xf32> to vector<128x512xf32>
    %7 = arith.addf %4, %6 : vector<128x512xf32>
    %8 = arith.negf %7 : vector<128x512xf32>
    %9 = math.exp %8 : vector<128x512xf32>
    %cst = arith.constant 1.000000e+00 : f32
    %10 = vector.broadcast %cst : f32 to vector<128x512xf32>
    %11 = arith.addf %10, %9 : vector<128x512xf32>
    %12 = arith.divf %10, %11 : vector<128x512xf32>
    %13 = arith.mulf %7, %12 : vector<128x512xf32>
    %c0_4 = arith.constant 0 : index
    %c0_5 = arith.constant 0 : index
    %14 = vector.load %arg3[%c0_4, %c0_5] : memref<128x512xf32, #tpu.memory_space<vmem>>, vector<128x512xf32>
    tpu.vector_store %arg3[%c0_4, %c0_5], %13 {strides = array<i32>} : memref<128x512xf32, #tpu.memory_space<vmem>>, vector<128x512xf32>,
    return
  }
  func.func @transform_0(%arg0: i32) -> (i32, i32) {
    %c0_i32 = arith.constant 0 : i32
    %c0_i32_0 = arith.constant 0 : i32
    return %c0_i32, %arg0 : i32, i32
  }
  func.func @transform_1(%arg0: i32) -> (i32, i32) {
    %c0_i32 = arith.constant 0 : i32
    %c0_i32_0 = arith.constant 0 : i32
    %c0_i32_1 = arith.constant 0 : i32
    return %c0_i32, %c0_i32_0 : i32, i32
  }
  func.func @transform_2(%arg0: i32) -> (i32, i32) {
    %c0_i32 = arith.constant 0 : i32
    %c0_i32_0 = arith.constant 0 : i32
    return %c0_i32, %arg0 : i32, i32
  }
}

</mosaic_0001>

<llo_original>
// kernel: conv_bn_silu.2
$region0: #{conv_bn_silu.2}
  #allocation0 [shape = 'u32[]', space=smem, size = 0x4, offset = 0x4, fixed_abs, tag = 'smem constant byte address 0x4 - core index']
  #allocation1 [shape = 'u32[144,128]{1,0:T(1,128)}', space=vmem, size = 0x12000, scoped, tag = 'internal scratch']
  %s0 = inlined_call_operand.vmem [shape: bf16[128,128], index: 0, kind: input, shape index: {}]
  %s1 = inlined_call_operand.vmem [shape: bf16[128,512], index: 1, kind: input, shape index: {}]
  %s2 = inlined_call_operand.vmem [shape: bf16[128,512], index: 2, kind: output, shape index: {0}]
  %s3 = inlined_call_operand.vmem [shape: f32[128,256], index: 3, kind: output, shape index: {1}]
  %4 = xla_tuple %s2, %s3
  %s5 = sld [smem:[#allocation0]]
  $region26: #{conv_bn_silu.2} parent=0
    _
  %s7 = ssub.s32 1, %s5
  %s8 = scalar_select 0, %s7, %s5
  // Predicated region
  $region2: #{conv_bn_silu.2} parent=0 // pred_check
    _
  $region3: #{conv_bn_silu.2} parent=0 // pred_check_branch
    %10 = sbr.rel (0) target = $region5
  $region4: #{conv_bn_silu.2} parent=0 // pred_region
    _
  $region5: #{conv_bn_silu.2} parent=0 // pred_fallthru
    _
  // Predicated region
  $region6: #{conv_bn_silu.2} parent=0 // pred_check
    _
  $region7: #{conv_bn_silu.2} parent=0 // pred_check_branch
    %12 = sbr.rel (0) target = $region9
  $region8: #{conv_bn_silu.2} parent=0 // pred_region
    _
  $region9: #{conv_bn_silu.2} parent=0 // pred_fallthru
    _
  %v14 = vld [vmem:[%s0] sm:$0xf]
  %v15 = vld [vmem:[%s0 + $0x4] sm:$0xf]
  %v16 = vld [vmem:[%s0 + $0x8] sm:$0xf]
  %v17 = vld [vmem:[%s0 + $0xc] sm:$0xf]
  %v18 = vld [vmem:[%s0 + $0x10] sm:$0xf]
  %v19 = vld [vmem:[%s0 + $0x14] sm:$0xf]
  %v20 = vld [vmem:[%s0 + $0x18] sm:$0xf]
  %v21 = vld [vmem:[%s0 + $0x1c] sm:$0xf]
  %v22 = vld [vmem:[%s0 + $0x20] sm:$0xf]
  %v23 = vld [vmem:[%s0 + $0x24] sm:$0xf]
  %v24 = vld [vmem:[%s0 + $0x28] sm:$0xf]
  %v25 = vld [vmem:[%s0 + $0x2c] sm:$0xf]
  %v26 = vld [vmem:[%s0 + $0x30] sm:$0xf]
  %v27 = vld [vmem:[%s0 + $0x34] sm:$0xf]
  %v28 = vld [vmem:[%s0 + $0x38] sm:$0xf]
  %v29 = vld [vmem:[%s0 + $0x3c] sm:$0xf]
  %v30 = vld [vmem:[%s1] sm:$0xff]
  %v31 = vld [vmem:[%s1 + $0x8] sm:$0xff]
  %v32 = vld [vmem:[%s1 + $0x10] sm:$0xff]
  %v33 = vld [vmem:[%s1 + $0x18] sm:$0xff]
  %v34 = vld [vmem:[%s1 + $0x20] sm:$0xff]
  %v35 = vld [vmem:[%s1 + $0x28] sm:$0xff]
  %v36 = vld [vmem:[%s1 + $0x30] sm:$0xff]
  %v37 = vld [vmem:[%s1 + $0x38] sm:$0xff]
  %v38 = vld [vmem:[%s1 + $0x40] sm:$0xff]
  %v39 = vld [vmem:[%s1 + $0x48] sm:$0xff]
  %v40 = vld [vmem:[%s1 + $0x50] sm:$0xff]
  %v41 = vld [vmem:[%s1 + $0x58] sm:$0xff]
  %v42 = vld [vmem:[%s1 + $0x60] sm:$0xff]
  %v43 = vld [vmem:[%s1 + $0x68] sm:$0xff]
  %v44 = vld [vmem:[%s1 + $0x70] sm:$0xff]
  %v45 = vld [vmem:[%s1 + $0x78] sm:$0xff]
  %v46 = vld [vmem:[%s1 + $0x80] sm:$0xff]
  %v47 = vld [vmem:[%s1 + $0x88] sm:$0xff]
  %v48 = vld [vmem:[%s1 + $0x90] sm:$0xff]
  %v49 = vld [vmem:[%s1 + $0x98] sm:$0xff]
  %v50 = vld [vmem:[%s1 + $0xa0] sm:$0xff]
  %v51 = vld [vmem:[%s1 + $0xa8] sm:$0xff]
  %v52 = vld [vmem:[%s1 + $0xb0] sm:$0xff]
  %v53 = vld [vmem:[%s1 + $0xb8] sm:$0xff]
  %v54 = vld [vmem:[%s1 + $0xc0] sm:$0xff]
  %v55 = vld [vmem:[%s1 + $0xc8] sm:$0xff]
  %v56 = vld [vmem:[%s1 + $0xd0] sm:$0xff]
  %v57 = vld [vmem:[%s1 + $0xd8] sm:$0xff]
  %v58 = vld [vmem:[%s1 + $0xe0] sm:$0xff]
  %v59 = vld [vmem:[%s1 + $0xe8] sm:$0xff]
  %v60 = vld [vmem:[%s1 + $0xf0] sm:$0xff]
  %v61 = vld [vmem:[%s1 + $0xf8] sm:$0xff]
  %v78 = vunpack.c.l.b16 %v14
  %v79 = vunpack.c.l.b16 %v15
  %v80 = vunpack.c.l.b16 %v16
  %v81 = vunpack.c.l.b16 %v17
  %v82 = vunpack.c.l.b16 %v18
  %v83 = vunpack.c.l.b16 %v19
  %v84 = vunpack.c.l.b16 %v20
  %v85 = vunpack.c.l.b16 %v21
  %v86 = vunpack.c.l.b16 %v22
  %v87 = vunpack.c.l.b16 %v23
  %v88 = vunpack.c.l.b16 %v24
  %v89 = vunpack.c.l.b16 %v25
  %v90 = vunpack.c.l.b16 %v26
  %v91 = vunpack.c.l.b16 %v27
  %v92 = vunpack.c.l.b16 %v28
  %v93 = vunpack.c.l.b16 %v29
  %v94 = vpack.c.b16 %v79, %v78
  %v95 = vpack.c.b16 %v81, %v80
  %v96 = vpack.c.b16 %v83, %v82
  %v97 = vpack.c.b16 %v85, %v84
  %v98 = vpack.c.b16 %v87, %v86
  %v99 = vpack.c.b16 %v89, %v88
  %v100 = vpack.c.b16 %v91, %v90
  %v101 = vpack.c.b16 %v93, %v92
  %v142 = vunpack.c.l.b16 %v30
  %v143 = vunpack.c.h.b16 %v30
  %v144 = vunpack.c.l.b16 %v31
  %v145 = vunpack.c.h.b16 %v31
  %v146 = vunpack.c.l.b16 %v32
  %v147 = vunpack.c.h.b16 %v32
  %v148 = vunpack.c.l.b16 %v33
  %v149 = vunpack.c.h.b16 %v33
  %v150 = vunpack.c.l.b16 %v34
  %v151 = vunpack.c.h.b16 %v34
  %v152 = vunpack.c.l.b16 %v35
  %v153 = vunpack.c.h.b16 %v35
  %v154 = vunpack.c.l.b16 %v36
  %v155 = vunpack.c.h.b16 %v36
  %v156 = vunpack.c.l.b16 %v37
  %v157 = vunpack.c.h.b16 %v37
  %v158 = vunpack.c.l.b16 %v38
  %v159 = vunpack.c.h.b16 %v38
  %v160 = vunpack.c.l.b16 %v39
  %v161 = vunpack.c.h.b16 %v39
  %v162 = vunpack.c.l.b16 %v40
  %v163 = vunpack.c.h.b16 %v40
  %v164 = vunpack.c.l.b16 %v41
  %v165 = vunpack.c.h.b16 %v41
  %v166 = vunpack.c.l.b16 %v42
  %v167 = vunpack.c.h.b16 %v42
  %v168 = vunpack.c.l.b16 %v43
  %v169 = vunpack.c.h.b16 %v43
  %v170 = vunpack.c.l.b16 %v44
  %v171 = vunpack.c.h.b16 %v44
  %v172 = vunpack.c.l.b16 %v45
  %v173 = vunpack.c.h.b16 %v45
  %v174 = vunpack.c.l.b16 %v46
  %v175 = vunpack.c.h.b16 %v46
  %v176 = vunpack.c.l.b16 %v47
  %v177 = vunpack.c.h.b16 %v47
  %v178 = vunpack.c.l.b16 %v48
  %v179 = vunpack.c.h.b16 %v48
  %v180 = vunpack.c.l.b16 %v49
  %v181 = vunpack.c.h.b16 %v49
  %v182 = vunpack.c.l.b16 %v50
  %v183 = vunpack.c.h.b16 %v50
  %v184 = vunpack.c.l.b16 %v51
  %v185 = vunpack.c.h.b16 %v51
  %v186 = vunpack.c.l.b16 %v52
  %v187 = vunpack.c.h.b16 %v52
  %v188 = vunpack.c.l.b16 %v53
  %v189 = vunpack.c.h.b16 %v53
  %v190 = vunpack.c.l.b16 %v54
  %v191 = vunpack.c.h.b16 %v54
  %v192 = vunpack.c.l.b16 %v55
  %v193 = vunpack.c.h.b16 %v55
  %v194 = vunpack.c.l.b16 %v56
  %v195 = vunpack.c.h.b16 %v56
  %v196 = vunpack.c.l.b16 %v57
  %v197 = vunpack.c.h.b16 %v57
  %v198 = vunpack.c.l.b16 %v58
  %v199 = vunpack.c.h.b16 %v58
  %v200 = vunpack.c.l.b16 %v59
  %v201 = vunpack.c.h.b16 %v59
  %v202 = vunpack.c.l.b16 %v60
  %v203 = vunpack.c.h.b16 %v60
  %v204 = vunpack.c.l.b16 %v61
  %v205 = vunpack.c.h.b16 %v61
  %v206 = vpack.c.b16 %v146, %v142
  %v207 = vpack.c.b16 %v147, %v143
  %v208 = vpack.c.b16 %v148, %v144
  %v209 = vpack.c.b16 %v149, %v145
  %v210 = vpack.c.b16 %v154, %v150
  %v211 = vpack.c.b16 %v155, %v151
  %v212 = vpack.c.b16 %v156, %v152
  %v213 = vpack.c.b16 %v157, %v153
  %v214 = vpack.c.b16 %v162, %v158
  %v215 = vpack.c.b16 %v163, %v159
  %v216 = vpack.c.b16 %v164, %v160
  %v217 = vpack.c.b16 %v165, %v161
  %v218 = vpack.c.b16 %v170, %v166
  %v219 = vpack.c.b16 %v171, %v167
  %v220 = vpack.c.b16 %v172, %v168
  %v221 = vpack.c.b16 %v173, %v169
  %v222 = vpack.c.b16 %v178, %v174
  %v223 = vpack.c.b16 %v179, %v175
  %v224 = vpack.c.b16 %v180, %v176
  %v225 = vpack.c.b16 %v181, %v177
  %v226 = vpack.c.b16 %v186, %v182
  %v227 = vpack.c.b16 %v187, %v183
  %v228 = vpack.c.b16 %v188, %v184
  %v229 = vpack.c.b16 %v189, %v185
  %v230 = vpack.c.b16 %v194, %v190
  %v231 = vpack.c.b16 %v195, %v191
  %v232 = vpack.c.b16 %v196, %v192
  %v233 = vpack.c.b16 %v197, %v193
  %v234 = vpack.c.b16 %v202, %v198
  %v235 = vpack.c.b16 %v203, %v199
  %v236 = vpack.c.b16 %v204, %v200
  %v237 = vpack.c.b16 %v205, %v201
  %270 = vmatprep.subr.bf16.mxu0 %v235
  %271 = vmatpush1.bf16.msra.mxu0 %v234
  %272 = vmatprep.subr.bf16.mxu0 %v231
  %273 = vmatpush1.bf16.msra.mxu0 %v230
  %274 = vmatprep.subr.bf16.mxu0 %v227
  %275 = vmatpush1.bf16.msra.mxu0 %v226
  %276 = vmatprep.subr.bf16.mxu0 %v223
  %277 = vmatpush1.bf16.msra.mxu0 %v222
  %278 = vmatprep.subr.bf16.mxu0 %v219
  %279 = vmatpush1.bf16.msra.mxu0 %v218
  %280 = vmatprep.subr.bf16.mxu0 %v215
  %281 = vmatpush1.bf16.msra.mxu0 %v214
  %282 = vmatprep.subr.bf16.mxu0 %v211
  %283 = vmatpush1.bf16.msra.mxu0 %v210
  %284 = vmatprep.subr.bf16.mxu0 %v207
  %285 = vmatpush1.bf16.msra.mxu0 %v206
  %286 = vmatprep.subr.bf16.mxu0 0
  %287 = vmatpush2.bf16.msra.mxu0 0
  %288 = vmatprep.subr.bf16.mxu0 0
  %289 = vmatpush2.bf16.msra.mxu0 0
  %290 = vmatprep.subr.bf16.mxu0 0
  %291 = vmatpush2.bf16.msra.mxu0 0
  %292 = vmatprep.subr.bf16.mxu0 0
  %293 = vmatpush2.bf16.msra.mxu0 0
  %294 = vmatprep.subr.bf16.mxu0 0
  %295 = vmatpush2.bf16.msra.mxu0 0
  %296 = vmatprep.subr.bf16.mxu0 0
  %297 = vmatpush2.bf16.msra.mxu0 0
  %298 = vmatprep.subr.bf16.mxu0 0
  %299 = vmatpush2.bf16.msra.mxu0 0
  %300 = vmatprep.subr.bf16.mxu0 0
  %301 = vmatpush2.bf16.msra.mxu0 0
  %302 = vmatprep.mubr.bf16.mxu0 0
  %303 = vmatmul.mubr.bf16.gmra.mxu0 %v94
  %v304 = vpop.f32.mrf.mxu0
  %v305 = vadd.f32 0.0, %v304
  %v306 = vpop.f32.mrf.mxu0
  %v307 = vadd.f32 0.0, %v306
  %v308 = vpop.f32.mrf.mxu0
  %v309 = vadd.f32 0.0, %v308
  %v310 = vpop.f32.mrf.mxu0
  %v311 = vadd.f32 0.0, %v310
  %312 = vmatprep.mubr.bf16.mxu0 0
  %313 = vmatmul.mubr.bf16.gmra.mxu0 %v95
  %v314 = vpop.f32.mrf.mxu0
  %v315 = vadd.f32 0.0, %v314
  %v316 = vpop.f32.mrf.mxu0
  %v317 = vadd.f32 0.0, %v316
  %v318 = vpop.f32.mrf.mxu0
  %v319 = vadd.f32 0.0, %v318
  %v320 = vpop.f32.mrf.mxu0
  %v321 = vadd.f32 0.0, %v320
  %322 = vmatprep.mubr.bf16.mxu0 0
  %323 = vmatmul.mubr.bf16.gmra.mxu0 %v96
  %v324 = vpop.f32.mrf.mxu0
  %v325 = vadd.f32 0.0, %v324
  %v326 = vpop.f32.mrf.mxu0
  %v327 = vadd.f32 0.0, %v326
  %v328 = vpop.f32.mrf.mxu0
  %v329 = vadd.f32 0.0, %v328
  %v330 = vpop.f32.mrf.mxu0
  %v331 = vadd.f32 0.0, %v330
  %332 = vmatprep.mubr.bf16.mxu0 0
  %333 = vmatmul.mubr.bf16.gmra.mxu0 %v97
  %v334 = vpop.f32.mrf.mxu0
  %v335 = vadd.f32 0.0, %v334
  %v336 = vpop.f32.mrf.mxu0
  %v337 = vadd.f32 0.0, %v336
  %v338 = vpop.f32.mrf.mxu0
  %v339 = vadd.f32 0.0, %v338
  %v340 = vpop.f32.mrf.mxu0
  %v341 = vadd.f32 0.0, %v340
  %342 = vmatprep.mubr.bf16.mxu0 0
  %343 = vmatmul.mubr.bf16.gmra.mxu0 %v98
  %v344 = vpop.f32.mrf.mxu0
  %v345 = vadd.f32 0.0, %v344
  %v346 = vpop.f32.mrf.mxu0
  %v347 = vadd.f32 0.0, %v346
  %v348 = vpop.f32.mrf.mxu0
  %v349 = vadd.f32 0.0, %v348
  %v350 = vpop.f32.mrf.mxu0
  %v351 = vadd.f32 0.0, %v350
  %352 = vmatprep.mubr.bf16.mxu0 0
  %353 = vmatmul.mubr.bf16.gmra.mxu0 %v99
  %v354 = vpop.f32.mrf.mxu0
  %v355 = vadd.f32 0.0, %v354
  %v356 = vpop.f32.mrf.mxu0
  %v357 = vadd.f32 0.0, %v356
  %v358 = vpop.f32.mrf.mxu0
  %v359 = vadd.f32 0.0, %v358
  %v360 = vpop.f32.mrf.mxu0
  %v361 = vadd.f32 0.0, %v360
  %362 = vmatprep.mubr.bf16.mxu0 0
  %363 = vmatmul.mubr.bf16.gmra.mxu0 %v100
  %v364 = vpop.f32.mrf.mxu0
  %v365 = vadd.f32 0.0, %v364
  %v366 = vpop.f32.mrf.mxu0
  %v367 = vadd.f32 0.0, %v366
  %v368 = vpop.f32.mrf.mxu0
  %v369 = vadd.f32 0.0, %v368
  %v370 = vpop.f32.mrf.mxu0
  %v371 = vadd.f32 0.0, %v370
  %372 = vmatprep.mubr.bf16.mxu0 0
  %373 = vmatmul.mubr.bf16.gmra.mxu0 %v101
  %v374 = vpop.f32.mrf.mxu0
  %v375 = vadd.f32 0.0, %v374
  %v376 = vpop.f32.mrf.mxu0
  %v377 = vadd.f32 0.0, %v376
  %v378 = vpop.f32.mrf.mxu0
  %v379 = vadd.f32 0.0, %v378
  %v380 = vpop.f32.mrf.mxu0
  %v381 = vadd.f32 0.0, %v380
  %382 = vdwg.mxu0
  %383 = vmatprep.subr.bf16.mxu0 %v237
  %384 = vmatpush1.bf16.msra.mxu0 %v236
  %385 = vmatprep.subr.bf16.mxu0 %v233
  %386 = vmatpush1.bf16.msra.mxu0 %v232
  %387 = vmatprep.subr.bf16.mxu0 %v229
  %388 = vmatpush1.bf16.msra.mxu0 %v228
  %389 = vmatprep.subr.bf16.mxu0 %v225
  %390 = vmatpush1.bf16.msra.mxu0 %v224
  %391 = vmatprep.subr.bf16.mxu0 %v221
  %392 = vmatpush1.bf16.msra.mxu0 %v220
  %393 = vmatprep.subr.bf16.mxu0 %v217
  %394 = vmatpush1.bf16.msra.mxu0 %v216
  %395 = vmatprep.subr.bf16.mxu0 %v213
  %396 = vmatpush1.bf16.msra.mxu0 %v212
  %397 = vmatprep.subr.bf16.mxu0 %v209
  %398 = vmatpush1.bf16.msra.mxu0 %v208
  %399 = vmatprep.subr.bf16.mxu0 0
  %400 = vmatpush2.bf16.msra.mxu0 0
  %401 = vmatprep.subr.bf16.mxu0 0
  %402 = vmatpush2.bf16.msra.mxu0 0
  %403 = vmatprep.subr.bf16.mxu0 0
  %404 = vmatpush2.bf16.msra.mxu0 0
  %405 = vmatprep.subr.bf16.mxu0 0
  %406 = vmatpush2.bf16.msra.mxu0 0
  %407 = vmatprep.subr.bf16.mxu0 0
  %408 = vmatpush2.bf16.msra.mxu0 0
  %409 = vmatprep.subr.bf16.mxu0 0
  %410 = vmatpush2.bf16.msra.mxu0 0
  %411 = vmatprep.subr.bf16.mxu0 0
  %412 = vmatpush2.bf16.msra.mxu0 0
  %413 = vmatprep.subr.bf16.mxu0 0
  %414 = vmatpush2.bf16.msra.mxu0 0
  %415 = vmatprep.mubr.bf16.mxu0 0
  %416 = vmatmul.mubr.bf16.gmra.mxu0 %v94
  %v417 = vpop.f32.mrf.mxu0
  %v418 = vadd.f32 0.0, %v417
  %v419 = vpop.f32.mrf.mxu0
  %v420 = vadd.f32 0.0, %v419
  %v421 = vpop.f32.mrf.mxu0
  %v422 = vadd.f32 0.0, %v421
  %v423 = vpop.f32.mrf.mxu0
  %v424 = vadd.f32 0.0, %v423
  %425 = vmatprep.mubr.bf16.mxu0 0
  %426 = vmatmul.mubr.bf16.gmra.mxu0 %v95
  %v427 = vpop.f32.mrf.mxu0
  %v428 = vadd.f32 0.0, %v427
  %v429 = vpop.f32.mrf.mxu0
  %v430 = vadd.f32 0.0, %v429
  %v431 = vpop.f32.mrf.mxu0
  %v432 = vadd.f32 0.0, %v431
  %v433 = vpop.f32.mrf.mxu0
  %v434 = vadd.f32 0.0, %v433
  %435 = vmatprep.mubr.bf16.mxu0 0
  %436 = vmatmul.mubr.bf16.gmra.mxu0 %v96
  %v437 = vpop.f32.mrf.mxu0
  %v438 = vadd.f32 0.0, %v437
  %v439 = vpop.f32.mrf.mxu0
  %v440 = vadd.f32 0.0, %v439
  %v441 = vpop.f32.mrf.mxu0
  %v442 = vadd.f32 0.0, %v441
  %v443 = vpop.f32.mrf.mxu0
  %v444 = vadd.f32 0.0, %v443
  %445 = vmatprep.mubr.bf16.mxu0 0
  %446 = vmatmul.mubr.bf16.gmra.mxu0 %v97
  %v447 = vpop.f32.mrf.mxu0
  %v448 = vadd.f32 0.0, %v447
  %v449 = vpop.f32.mrf.mxu0
  %v450 = vadd.f32 0.0, %v449
  %v451 = vpop.f32.mrf.mxu0
  %v452 = vadd.f32 0.0, %v451
  %v453 = vpop.f32.mrf.mxu0
  %v454 = vadd.f32 0.0, %v453
  %455 = vmatprep.mubr.bf16.mxu0 0
  %456 = vmatmul.mubr.bf16.gmra.mxu0 %v98
  %v457 = vpop.f32.mrf.mxu0
  %v458 = vadd.f32 0.0, %v457
  %v459 = vpop.f32.mrf.mxu0
  %v460 = vadd.f32 0.0, %v459
  %v461 = vpop.f32.mrf.mxu0
  %v462 = vadd.f32 0.0, %v461
  %v463 = vpop.f32.mrf.mxu0
  %v464 = vadd.f32 0.0, %v463
  %465 = vmatprep.mubr.bf16.mxu0 0
  %466 = vmatmul.mubr.bf16.gmra.mxu0 %v99
  %v467 = vpop.f32.mrf.mxu0
  %v468 = vadd.f32 0.0, %v467
  %v469 = vpop.f32.mrf.mxu0
  %v470 = vadd.f32 0.0, %v469
  %v471 = vpop.f32.mrf.mxu0
  %v472 = vadd.f32 0.0, %v471
  %v473 = vpop.f32.mrf.mxu0
  %v474 = vadd.f32 0.0, %v473
  %475 = vmatprep.mubr.bf16.mxu0 0
  %476 = vmatmul.mubr.bf16.gmra.mxu0 %v100
  %v477 = vpop.f32.mrf.mxu0
  %v478 = vadd.f32 0.0, %v477
  %v479 = vpop.f32.mrf.mxu0
  %v480 = vadd.f32 0.0, %v479
  %v481 = vpop.f32.mrf.mxu0
  %v482 = vadd.f32 0.0, %v481
  %v483 = vpop.f32.mrf.mxu0
  %v484 = vadd.f32 0.0, %v483
  %485 = vmatprep.mubr.bf16.mxu0 0
  %486 = vmatmul.mubr.bf16.gmra.mxu0 %v101
  %v487 = vpop.f32.mrf.mxu0
  %v488 = vadd.f32 0.0, %v487
  %v489 = vpop.f32.mrf.mxu0
  %v490 = vadd.f32 0.0, %v489
  %v491 = vpop.f32.mrf.mxu0
  %v492 = vadd.f32 0.0, %v491
  %v493 = vpop.f32.mrf.mxu0
  %v494 = vadd.f32 0.0, %v493
  %495 = vdwg.mxu0
  %v496 = vpack.c.bf16 %v309, %v305
  %v497 = vpack.c.bf16 %v311, %v307
  %v498 = vpack.c.bf16 %v422, %v418
  %v499 = vpack.c.bf16 %v424, %v420
  %v500 = vpack.c.bf16 %v319, %v315
  %v501 = vpack.c.bf16 %v321, %v317
  %v502 = vpack.c.bf16 %v432, %v428
  %v503 = vpack.c.bf16 %v434, %v430
  %v504 = vpack.c.bf16 %v329, %v325
  %v505 = vpack.c.bf16 %v331, %v327
  %v506 = vpack.c.bf16 %v442, %v438
  %v507 = vpack.c.bf16 %v444, %v440
  %v508 = vpack.c.bf16 %v339, %v335
  %v509 = vpack.c.bf16 %v341, %v337
  %v510 = vpack.c.bf16 %v452, %v448
  %v511 = vpack.c.bf16 %v454, %v450
  %v512 = vpack.c.bf16 %v349, %v345
  %v513 = vpack.c.bf16 %v351, %v347
  %v514 = vpack.c.bf16 %v462, %v458
  %v515 = vpack.c.bf16 %v464, %v460
  %v516 = vpack.c.bf16 %v359, %v355
  %v517 = vpack.c.bf16 %v361, %v357
  %v518 = vpack.c.bf16 %v472, %v468
  %v519 = vpack.c.bf16 %v474, %v470
  %v520 = vpack.c.bf16 %v369, %v365
  %v521 = vpack.c.bf16 %v371, %v367
  %v522 = vpack.c.bf16 %v482, %v478
  %v523 = vpack.c.bf16 %v484, %v480
  %v524 = vpack.c.bf16 %v379, %v375
  %v525 = vpack.c.bf16 %v381, %v377
  %v526 = vpack.c.bf16 %v492, %v488
  %v527 = vpack.c.bf16 %v494, %v490
  %v560 = vunpack.c.l.b16 %v496
  %v561 = vunpack.c.l.b16 %v497
  %v562 = vunpack.c.l.b16 %v498
  %v563 = vunpack.c.l.b16 %v499
  %v564 = vunpack.c.h.b16 %v496
  %v565 = vunpack.c.h.b16 %v497
  %v566 = vunpack.c.h.b16 %v498
  %v567 = vunpack.c.h.b16 %v499
  %v568 = vunpack.c.l.b16 %v500
  %v569 = vunpack.c.l.b16 %v501
  %v570 = vunpack.c.l.b16 %v502
  %v571 = vunpack.c.l.b16 %v503
  %v572 = vunpack.c.h.b16 %v500
  %v573 = vunpack.c.h.b16 %v501
  %v574 = vunpack.c.h.b16 %v502
  %v575 = vunpack.c.h.b16 %v503
  %v576 = vunpack.c.l.b16 %v504
  %v577 = vunpack.c.l.b16 %v505
  %v578 = vunpack.c.l.b16 %v506
  %v579 = vunpack.c.l.b16 %v507
  %v580 = vunpack.c.h.b16 %v504
  %v581 = vunpack.c.h.b16 %v505
  %v582 = vunpack.c.h.b16 %v506
  %v583 = vunpack.c.h.b16 %v507
  %v584 = vunpack.c.l.b16 %v508
  %v585 = vunpack.c.l.b16 %v509
  %v586 = vunpack.c.l.b16 %v510
  %v587 = vunpack.c.l.b16 %v511
  %v588 = vunpack.c.h.b16 %v508
  %v589 = vunpack.c.h.b16 %v509
  %v590 = vunpack.c.h.b16 %v510
  %v591 = vunpack.c.h.b16 %v511
  %v592 = vunpack.c.l.b16 %v512
  %v593 = vunpack.c.l.b16 %v513
  %v594 = vunpack.c.l.b16 %v514
  %v595 = vunpack.c.l.b16 %v515
  %v596 = vunpack.c.h.b16 %v512
  %v597 = vunpack.c.h.b16 %v513
  %v598 = vunpack.c.h.b16 %v514
  %v599 = vunpack.c.h.b16 %v515
  %v600 = vunpack.c.l.b16 %v516
  %v601 = vunpack.c.l.b16 %v517
  %v602 = vunpack.c.l.b16 %v518
  %v603 = vunpack.c.l.b16 %v519
  %v604 = vunpack.c.h.b16 %v516
  %v605 = vunpack.c.h.b16 %v517
  %v606 = vunpack.c.h.b16 %v518
  %v607 = vunpack.c.h.b16 %v519
  %v608 = vunpack.c.l.b16 %v520
  %v609 = vunpack.c.l.b16 %v521
  %v610 = vunpack.c.l.b16 %v522
  %v611 = vunpack.c.l.b16 %v523
  %v612 = vunpack.c.h.b16 %v520
  %v613 = vunpack.c.h.b16 %v521
  %v614 = vunpack.c.h.b16 %v522
  %v615 = vunpack.c.h.b16 %v523
  %v616 = vunpack.c.l.b16 %v524
  %v617 = vunpack.c.l.b16 %v525
  %v618 = vunpack.c.l.b16 %v526
  %v619 = vunpack.c.l.b16 %v527
  %v620 = vunpack.c.h.b16 %v524
  %v621 = vunpack.c.h.b16 %v525
  %v622 = vunpack.c.h.b16 %v526
  %v623 = vunpack.c.h.b16 %v527
  %v624 = vpack.c.b16 %v561, %v560
  %v625 = vpack.c.b16 %v563, %v562
  %v626 = vpack.c.b16 %v565, %v564
  %v627 = vpack.c.b16 %v567, %v566
  %v628 = vpack.c.b16 %v569, %v568
  %v629 = vpack.c.b16 %v571, %v570
  %v630 = vpack.c.b16 %v573, %v572
  %v631 = vpack.c.b16 %v575, %v574
  %v632 = vpack.c.b16 %v577, %v576
  %v633 = vpack.c.b16 %v579, %v578
  %v634 = vpack.c.b16 %v581, %v580
  %v635 = vpack.c.b16 %v583, %v582
  %v636 = vpack.c.b16 %v585, %v584
  %v637 = vpack.c.b16 %v587, %v586
  %v638 = vpack.c.b16 %v589, %v588
  %v639 = vpack.c.b16 %v591, %v590
  %v640 = vpack.c.b16 %v593, %v592
  %v641 = vpack.c.b16 %v595, %v594
  %v642 = vpack.c.b16 %v597, %v596
  %v643 = vpack.c.b16 %v599, %v598
  %v644 = vpack.c.b16 %v601, %v600
  %v645 = vpack.c.b16 %v603, %v602
  %v646 = vpack.c.b16 %v605, %v604
  %v647 = vpack.c.b16 %v607, %v606
  %v648 = vpack.c.b16 %v609, %v608
  %v649 = vpack.c.b16 %v611, %v610
  %v650 = vpack.c.b16 %v613, %v612
  %v651 = vpack.c.b16 %v615, %v614
  %v652 = vpack.c.b16 %v617, %v616
  %v653 = vpack.c.b16 %v619, %v618
  %v654 = vpack.c.b16 %v621, %v620
  %v655 = vpack.c.b16 %v623, %v622
  %688 = vst [vmem:[%s2] sm:$0xff] %v624
  %689 = vst [vmem:[%s2 + $0x8] sm:$0xff] %v625
  %690 = vst [vmem:[%s2 + $0x10] sm:$0xff] %v626
  %691 = vst [vmem:[%s2 + $0x18] sm:$0xff] %v627
  %692 = vst [vmem:[%s2 + $0x20] sm:$0xff] %v628
  %693 = vst [vmem:[%s2 + $0x28] sm:$0xff] %v629
  %694 = vst [vmem:[%s2 + $0x30] sm:$0xff] %v630
  %695 = vst [vmem:[%s2 + $0x38] sm:$0xff] %v631
  %696 = vst [vmem:[%s2 + $0x40] sm:$0xff] %v632
  %697 = vst [vmem:[%s2 + $0x48] sm:$0xff] %v633
  %698 = vst [vmem:[%s2 + $0x50] sm:$0xff] %v634
  %699 = vst [vmem:[%s2 + $0x58] sm:$0xff] %v635
  %700 = vst [vmem:[%s2 + $0x60] sm:$0xff] %v636
  %701 = vst [vmem:[%s2 + $0x68] sm:$0xff] %v637
  %702 = vst [vmem:[%s2 + $0x70] sm:$0xff] %v638
  %703 = vst [vmem:[%s2 + $0x78] sm:$0xff] %v639
  %704 = vst [vmem:[%s2 + $0x80] sm:$0xff] %v640
  %705 = vst [vmem:[%s2 + $0x88] sm:$0xff] %v641
  %706 = vst [vmem:[%s2 + $0x90] sm:$0xff] %v642
  %707 = vst [vmem:[%s2 + $0x98] sm:$0xff] %v643
  %708 = vst [vmem:[%s2 + $0xa0] sm:$0xff] %v644
  %709 = vst [vmem:[%s2 + $0xa8] sm:$0xff] %v645
  %710 = vst [vmem:[%s2 + $0xb0] sm:$0xff] %v646
  %711 = vst [vmem:[%s2 + $0xb8] sm:$0xff] %v647
  %712 = vst [vmem:[%s2 + $0xc0] sm:$0xff] %v648
  %713 = vst [vmem:[%s2 + $0xc8] sm:$0xff] %v649
  %714 = vst [vmem:[%s2 + $0xd0] sm:$0xff] %v650
  %715 = vst [vmem:[%s2 + $0xd8] sm:$0xff] %v651
  %716 = vst [vmem:[%s2 + $0xe0] sm:$0xff] %v652
  %717 = vst [vmem:[%s2 + $0xe8] sm:$0xff] %v653
  %718 = vst [vmem:[%s2 + $0xf0] sm:$0xff] %v654
  %719 = vst [vmem:[%s2 + $0xf8] sm:$0xff] %v655
  %v720 = vadd.f32 %v305, %v307
  %v721 = vadd.f32 %v720, %v418
  %v722 = vadd.f32 %v721, %v420
  %723 = vadd.xlane.f32.xlu0 %v722
  %v724 = vpop.xlane.xlu0 %723
  %v725 = vadd.f32 %v309, %v311
  %v726 = vadd.f32 %v725, %v422
  %v727 = vadd.f32 %v726, %v424
  %728 = vadd.xlane.f32.xlu0 %v727
  %v729 = vpop.xlane.xlu0 %728
  %v730 = vadd.f32 %v315, %v317
  %v731 = vadd.f32 %v730, %v428
  %v732 = vadd.f32 %v731, %v430
  %733 = vadd.xlane.f32.xlu0 %v732
  %v734 = vpop.xlane.xlu0 %733
  %v735 = vadd.f32 %v319, %v321
  %v736 = vadd.f32 %v735, %v432
  %v737 = vadd.f32 %v736, %v434
  %738 = vadd.xlane.f32.xlu0 %v737
  %v739 = vpop.xlane.xlu0 %738
  %v740 = vadd.f32 %v325, %v327
  %v741 = vadd.f32 %v740, %v438
  %v742 = vadd.f32 %v741, %v440
  %743 = vadd.xlane.f32.xlu0 %v742
  %v744 = vpop.xlane.xlu0 %743
  %v745 = vadd.f32 %v329, %v331
  %v746 = vadd.f32 %v745, %v442
  %v747 = vadd.f32 %v746, %v444
  %748 = vadd.xlane.f32.xlu0 %v747
  %v749 = vpop.xlane.xlu0 %748
  %v750 = vadd.f32 %v335, %v337
  %v751 = vadd.f32 %v750, %v448
  %v752 = vadd.f32 %v751, %v450
  %753 = vadd.xlane.f32.xlu0 %v752
  %v754 = vpop.xlane.xlu0 %753
  %v755 = vadd.f32 %v339, %v341
  %v756 = vadd.f32 %v755, %v452
  %v757 = vadd.f32 %v756, %v454
  %758 = vadd.xlane.f32.xlu0 %v757
  %v759 = vpop.xlane.xlu0 %758
  %v760 = vadd.f32 %v345, %v347
  %v761 = vadd.f32 %v760, %v458
  %v762 = vadd.f32 %v761, %v460
  %763 = vadd.xlane.f32.xlu0 %v762
  %v764 = vpop.xlane.xlu0 %763
  %v765 = vadd.f32 %v349, %v351
  %v766 = vadd.f32 %v765, %v462
  %v767 = vadd.f32 %v766, %v464
  %768 = vadd.xlane.f32.xlu0 %v767
  %v769 = vpop.xlane.xlu0 %768
  %v770 = vadd.f32 %v355, %v357
  %v771 = vadd.f32 %v770, %v468
  %v772 = vadd.f32 %v771, %v470
  %773 = vadd.xlane.f32.xlu0 %v772
  %v774 = vpop.xlane.xlu0 %773
  %v775 = vadd.f32 %v359, %v361
  %v776 = vadd.f32 %v775, %v472
  %v777 = vadd.f32 %v776, %v474
  %778 = vadd.xlane.f32.xlu0 %v777
  %v779 = vpop.xlane.xlu0 %778
  %v780 = vadd.f32 %v365, %v367
  %v781 = vadd.f32 %v780, %v478
  %v782 = vadd.f32 %v781, %v480
  %783 = vadd.xlane.f32.xlu0 %v782
  %v784 = vpop.xlane.xlu0 %783
  %v785 = vadd.f32 %v369, %v371
  %v786 = vadd.f32 %v785, %v482
  %v787 = vadd.f32 %v786, %v484
  %788 = vadd.xlane.f32.xlu0 %v787
  %v789 = vpop.xlane.xlu0 %788
  %v790 = vadd.f32 %v375, %v377
  %v791 = vadd.f32 %v790, %v488
  %v792 = vadd.f32 %v791, %v490
  %793 = vadd.xlane.f32.xlu0 %v792
  %v794 = vpop.xlane.xlu0 %793
  %v795 = vadd.f32 %v379, %v381
  %v796 = vadd.f32 %v795, %v492
  %v797 = vadd.f32 %v796, %v494
  %798 = vadd.xlane.f32.xlu0 %v797
  %v799 = vpop.xlane.xlu0 %798
  %v800 = vmul.f32 %v305, %v305
  %v801 = vmul.f32 %v307, %v307
  %v802 = vmul.f32 %v418, %v418
  %v803 = vmul.f32 %v420, %v420
  %v804 = vmul.f32 %v309, %v309
  %v805 = vmul.f32 %v311, %v311
  %v806 = vmul.f32 %v422, %v422
  %v807 = vmul.f32 %v424, %v424
  %v808 = vmul.f32 %v315, %v315
  %v809 = vmul.f32 %v317, %v317
  %v810 = vmul.f32 %v428, %v428
  %v811 = vmul.f32 %v430, %v430
  %v812 = vmul.f32 %v319, %v319
  %v813 = vmul.f32 %v321, %v321
  %v814 = vmul.f32 %v432, %v432
  %v815 = vmul.f32 %v434, %v434
  %v816 = vmul.f32 %v325, %v325
  %v817 = vmul.f32 %v327, %v327
  %v818 = vmul.f32 %v438, %v438
  %v819 = vmul.f32 %v440, %v440
  %v820 = vmul.f32 %v329, %v329
  %v821 = vmul.f32 %v331, %v331
  %v822 = vmul.f32 %v442, %v442
  %v823 = vmul.f32 %v444, %v444
  %v824 = vmul.f32 %v335, %v335
  %v825 = vmul.f32 %v337, %v337
  %v826 = vmul.f32 %v448, %v448
  %v827 = vmul.f32 %v450, %v450
  %v828 = vmul.f32 %v339, %v339
  %v829 = vmul.f32 %v341, %v341
  %v830 = vmul.f32 %v452, %v452
  %v831 = vmul.f32 %v454, %v454
  %v832 = vmul.f32 %v345, %v345
  %v833 = vmul.f32 %v347, %v347
  %v834 = vmul.f32 %v458, %v458
  %v835 = vmul.f32 %v460, %v460
  %v836 = vmul.f32 %v349, %v349
  %v837 = vmul.f32 %v351, %v351
  %v838 = vmul.f32 %v462, %v462
  %v839 = vmul.f32 %v464, %v464
  %v840 = vmul.f32 %v355, %v355
  %v841 = vmul.f32 %v357, %v357
  %v842 = vmul.f32 %v468, %v468
  %v843 = vmul.f32 %v470, %v470
  %v844 = vmul.f32 %v359, %v359
  %v845 = vmul.f32 %v361, %v361
  %v846 = vmul.f32 %v472, %v472
  %v847 = vmul.f32 %v474, %v474
  %v848 = vmul.f32 %v365, %v365
  %v849 = vmul.f32 %v367, %v367
  %v850 = vmul.f32 %v478, %v478
  %v851 = vmul.f32 %v480, %v480
  %v852 = vmul.f32 %v369, %v369
  %v853 = vmul.f32 %v371, %v371
  %v854 = vmul.f32 %v482, %v482
  %v855 = vmul.f32 %v484, %v484
  %v856 = vmul.f32 %v375, %v375
  %v857 = vmul.f32 %v377, %v377
  %v858 = vmul.f32 %v488, %v488
  %v859 = vmul.f32 %v490, %v490
  %v860 = vmul.f32 %v379, %v379
  %v861 = vmul.f32 %v381, %v381
  %v862 = vmul.f32 %v492, %v492
  %v863 = vmul.f32 %v494, %v494
  %v864 = vadd.f32 %v800, %v801
  %v865 = vadd.f32 %v864, %v802
  %v866 = vadd.f32 %v865, %v803
  %867 = vadd.xlane.f32.xlu0 %v866
  %v868 = vpop.xlane.xlu0 %867
  %v869 = vadd.f32 %v804, %v805
  %v870 = vadd.f32 %v869, %v806
  %v871 = vadd.f32 %v870, %v807
  %872 = vadd.xlane.f32.xlu0 %v871
  %v873 = vpop.xlane.xlu0 %872
  %v874 = vadd.f32 %v808, %v809
  %v875 = vadd.f32 %v874, %v810
  %v876 = vadd.f32 %v875, %v811
  %877 = vadd.xlane.f32.xlu0 %v876
  %v878 = vpop.xlane.xlu0 %877
  %v879 = vadd.f32 %v812, %v813
  %v880 = vadd.f32 %v879, %v814
  %v881 = vadd.f32 %v880, %v815
  %882 = vadd.xlane.f32.xlu0 %v881
  %v883 = vpop.xlane.xlu0 %882
  %v884 = vadd.f32 %v816, %v817
  %v885 = vadd.f32 %v884, %v818
  %v886 = vadd.f32 %v885, %v819
  %887 = vadd.xlane.f32.xlu0 %v886
  %v888 = vpop.xlane.xlu0 %887
  %v889 = vadd.f32 %v820, %v821
  %v890 = vadd.f32 %v889, %v822
  %v891 = vadd.f32 %v890, %v823
  %892 = vadd.xlane.f32.xlu0 %v891
  %v893 = vpop.xlane.xlu0 %892
  %v894 = vadd.f32 %v824, %v825
  %v895 = vadd.f32 %v894, %v826
  %v896 = vadd.f32 %v895, %v827
  %897 = vadd.xlane.f32.xlu0 %v896
  %v898 = vpop.xlane.xlu0 %897
  %v899 = vadd.f32 %v828, %v829
  %v900 = vadd.f32 %v899, %v830
  %v901 = vadd.f32 %v900, %v831
  %902 = vadd.xlane.f32.xlu0 %v901
  %v903 = vpop.xlane.xlu0 %902
  %v904 = vadd.f32 %v832, %v833
  %v905 = vadd.f32 %v904, %v834
  %v906 = vadd.f32 %v905, %v835
  %907 = vadd.xlane.f32.xlu0 %v906
  %v908 = vpop.xlane.xlu0 %907
  %v909 = vadd.f32 %v836, %v837
  %v910 = vadd.f32 %v909, %v838
  %v911 = vadd.f32 %v910, %v839
  %912 = vadd.xlane.f32.xlu0 %v911
  %v913 = vpop.xlane.xlu0 %912
  %v914 = vadd.f32 %v840, %v841
  %v915 = vadd.f32 %v914, %v842
  %v916 = vadd.f32 %v915, %v843
  %917 = vadd.xlane.f32.xlu0 %v916
  %v918 = vpop.xlane.xlu0 %917
  %v919 = vadd.f32 %v844, %v845
  %v920 = vadd.f32 %v919, %v846
  %v921 = vadd.f32 %v920, %v847
  %922 = vadd.xlane.f32.xlu0 %v921
  %v923 = vpop.xlane.xlu0 %922
  %v924 = vadd.f32 %v848, %v849
  %v925 = vadd.f32 %v924, %v850
  %v926 = vadd.f32 %v925, %v851
  %927 = vadd.xlane.f32.xlu0 %v926
  %v928 = vpop.xlane.xlu0 %927
  %v929 = vadd.f32 %v852, %v853
  %v930 = vadd.f32 %v929, %v854
  %v931 = vadd.f32 %v930, %v855
  %932 = vadd.xlane.f32.xlu0 %v931
  %v933 = vpop.xlane.xlu0 %932
  %v934 = vadd.f32 %v856, %v857
  %v935 = vadd.f32 %v934, %v858
  %v936 = vadd.f32 %v935, %v859
  %937 = vadd.xlane.f32.xlu0 %v936
  %v938 = vpop.xlane.xlu0 %937
  %v939 = vadd.f32 %v860, %v861
  %v940 = vadd.f32 %v939, %v862
  %v941 = vadd.f32 %v940, %v863
  %942 = vadd.xlane.f32.xlu0 %v941
  %v943 = vpop.xlane.xlu0 %942
  %944 = vst [vmem:[%s3] sm:$0xff] %v724
  %945 = vst [vmem:[%s3 + $0x10] sm:$0xff] %v729
  %946 = vst [vmem:[%s3 + $0x20] sm:$0xff] %v734
  %947 = vst [vmem:[%s3 + $0x30] sm:$0xff] %v739
  %948 = vst [vmem:[%s3 + $0x40] sm:$0xff] %v744
  %949 = vst [vmem:[%s3 + $0x50] sm:$0xff] %v749
  %950 = vst [vmem:[%s3 + $0x60] sm:$0xff] %v754
  %951 = vst [vmem:[%s3 + $0x70] sm:$0xff] %v759
  %952 = vst [vmem:[%s3 + $0x80] sm:$0xff] %v764
  %953 = vst [vmem:[%s3 + $0x90] sm:$0xff] %v769
  %954 = vst [vmem:[%s3 + $0xa0] sm:$0xff] %v774
  %955 = vst [vmem:[%s3 + $0xb0] sm:$0xff] %v779
  %956 = vst [vmem:[%s3 + $0xc0] sm:$0xff] %v784
  %957 = vst [vmem:[%s3 + $0xd0] sm:$0xff] %v789
  %958 = vst [vmem:[%s3 + $0xe0] sm:$0xff] %v794
  %959 = vst [vmem:[%s3 + $0xf0] sm:$0xff] %v799
  %960 = vst [vmem:[%s3 + $0x8] sm:$0xff] %v868
  %961 = vst [vmem:[%s3 + $0x18] sm:$0xff] %v873
  %962 = vst [vmem:[%s3 + $0x28] sm:$0xff] %v878
  %963 = vst [vmem:[%s3 + $0x38] sm:$0xff] %v883
  %964 = vst [vmem:[%s3 + $0x48] sm:$0xff] %v888
  %965 = vst [vmem:[%s3 + $0x58] sm:$0xff] %v893
  %966 = vst [vmem:[%s3 + $0x68] sm:$0xff] %v898
  %967 = vst [vmem:[%s3 + $0x78] sm:$0xff] %v903
  %968 = vst [vmem:[%s3 + $0x88] sm:$0xff] %v908
  %969 = vst [vmem:[%s3 + $0x98] sm:$0xff] %v913
  %970 = vst [vmem:[%s3 + $0xa8] sm:$0xff] %v918
  %971 = vst [vmem:[%s3 + $0xb8] sm:$0xff] %v923
  %972 = vst [vmem:[%s3 + $0xc8] sm:$0xff] %v928
  %973 = vst [vmem:[%s3 + $0xd8] sm:$0xff] %v933
  %974 = vst [vmem:[%s3 + $0xe8] sm:$0xff] %v938
  %975 = vst [vmem:[%s3 + $0xf8] sm:$0xff] %v943
  // Predicated region
  $region10: #{conv_bn_silu.2} parent=0 // pred_check
    _
  $region11: #{conv_bn_silu.2} parent=0 // pred_check_branch
    %977 = sbr.rel (0) target = $region13
  $region12: #{conv_bn_silu.2} parent=0 // pred_region
    _
  $region13: #{conv_bn_silu.2} parent=0 // pred_fallthru
    _
  // Predicated region
  $region14: #{conv_bn_silu.2} parent=0 // pred_check
    _
  $region15: #{conv_bn_silu.2} parent=0 // pred_check_branch
    %979 = sbr.rel (0) target = $region17
  $region16: #{conv_bn_silu.2} parent=0 // pred_region
    _
  $region17: #{conv_bn_silu.2} parent=0 // pred_fallthru
    _
  // Predicated region
  $region18: #{conv_bn_silu.2} parent=0 // pred_check
    _
  $region19: #{conv_bn_silu.2} parent=0 // pred_check_branch
    %981 = sbr.rel (0) target = $region21
  $region20: #{conv_bn_silu.2} parent=0 // pred_region
    _
  $region21: #{conv_bn_silu.2} parent=0 // pred_fallthru
    _
  // Predicated region
  $region22: #{conv_bn_silu.2} parent=0 // pred_check
    _
  $region23: #{conv_bn_silu.2} parent=0 // pred_check_branch
    %983 = sbr.rel (0) target = $region25
  $region24: #{conv_bn_silu.2} parent=0 // pred_region
    _
  $region25: #{conv_bn_silu.2} parent=0 // pred_fallthru
    _

// kernel: conv_bn_silu.3
$region0: #{conv_bn_silu.3}
  #allocation0 [shape = 'u32[]', space=smem, size = 0x4, offset = 0x4, fixed_abs, tag = 'smem constant byte address 0x4 - core index']
  #allocation1 [shape = 'u32[144,128]{1,0:T(1,128)}', space=vmem, size = 0x12000, scoped, tag = 'internal scratch']
  %s0 = inlined_call_operand.vmem [shape: bf16[128,512], index: 0, kind: input, shape index: {}]
  %s1 = inlined_call_operand.vmem [shape: f32[128,128], index: 1, kind: input, shape index: {}]
  %s2 = inlined_call_operand.vmem [shape: f32[128,512], index: 2, kind: output, shape index: {}]
  %s3 = sld [smem:[#allocation0]]
  $region18: #{conv_bn_silu.3} parent=0
    _
  %s5 = ssub.s32 1, %s3
  %s6 = scalar_select 0, %s5, %s3
  // Predicated region
  $region2: #{conv_bn_silu.3} parent=0 // pred_check
    _
  $region3: #{conv_bn_silu.3} parent=0 // pred_check_branch
    %8 = sbr.rel (0) target = $region5
  $region4: #{conv_bn_silu.3} parent=0 // pred_region
    _
  $region5: #{conv_bn_silu.3} parent=0 // pred_fallthru
    _
  // Predicated region
  $region6: #{conv_bn_silu.3} parent=0 // pred_check
    _
  $region7: #{conv_bn_silu.3} parent=0 // pred_check_branch
    %10 = sbr.rel (0) target = $region9
  $region8: #{conv_bn_silu.3} parent=0 // pred_region
    _
  $region9: #{conv_bn_silu.3} parent=0 // pred_fallthru
    _
  %v11 = vld [vmem:[%s0] sm:$0xff]
  %v12 = vld [vmem:[%s0 + $0x8] sm:$0xff]
  %v13 = vld [vmem:[%s0 + $0x10] sm:$0xff]
  %v14 = vld [vmem:[%s0 + $0x18] sm:$0xff]
  %v15 = vld [vmem:[%s0 + $0x20] sm:$0xff]
  %v16 = vld [vmem:[%s0 + $0x28] sm:$0xff]
  %v17 = vld [vmem:[%s0 + $0x30] sm:$0xff]
  %v18 = vld [vmem:[%s0 + $0x38] sm:$0xff]
  %v19 = vld [vmem:[%s0 + $0x40] sm:$0xff]
  %v20 = vld [vmem:[%s0 + $0x48] sm:$0xff]
  %v21 = vld [vmem:[%s0 + $0x50] sm:$0xff]
  %v22 = vld [vmem:[%s0 + $0x58] sm:$0xff]
  %v23 = vld [vmem:[%s0 + $0x60] sm:$0xff]
  %v24 = vld [vmem:[%s0 + $0x68] sm:$0xff]
  %v25 = vld [vmem:[%s0 + $0x70] sm:$0xff]
  %v26 = vld [vmem:[%s0 + $0x78] sm:$0xff]
  %v27 = vld [vmem:[%s0 + $0x80] sm:$0xff]
  %v28 = vld [vmem:[%s0 + $0x88] sm:$0xff]
  %v29 = vld [vmem:[%s0 + $0x90] sm:$0xff]
  %v30 = vld [vmem:[%s0 + $0x98] sm:$0xff]
  %v31 = vld [vmem:[%s0 + $0xa0] sm:$0xff]
  %v32 = vld [vmem:[%s0 + $0xa8] sm:$0xff]
  %v33 = vld [vmem:[%s0 + $0xb0] sm:$0xff]
  %v34 = vld [vmem:[%s0 + $0xb8] sm:$0xff]
  %v35 = vld [vmem:[%s0 + $0xc0] sm:$0xff]
  %v36 = vld [vmem:[%s0 + $0xc8] sm:$0xff]
  %v37 = vld [vmem:[%s0 + $0xd0] sm:$0xff]
  %v38 = vld [vmem:[%s0 + $0xd8] sm:$0xff]
  %v39 = vld [vmem:[%s0 + $0xe0] sm:$0xff]
  %v40 = vld [vmem:[%s0 + $0xe8] sm:$0xff]
  %v41 = vld [vmem:[%s0 + $0xf0] sm:$0xff]
  %v42 = vld [vmem:[%s0 + $0xf8] sm:$0xff]
  %v43 = vunpack.c.l.bf16 %v11
  %v44 = vunpack.c.h.bf16 %v11
  %v45 = vunpack.c.l.bf16 %v12
  %v46 = vunpack.c.h.bf16 %v12
  %v47 = vunpack.c.l.bf16 %v13
  %v48 = vunpack.c.h.bf16 %v13
  %v49 = vunpack.c.l.bf16 %v14
  %v50 = vunpack.c.h.bf16 %v14
  %v51 = vunpack.c.l.bf16 %v15
  %v52 = vunpack.c.h.bf16 %v15
  %v53 = vunpack.c.l.bf16 %v16
  %v54 = vunpack.c.h.bf16 %v16
  %v55 = vunpack.c.l.bf16 %v17
  %v56 = vunpack.c.h.bf16 %v17
  %v57 = vunpack.c.l.bf16 %v18
  %v58 = vunpack.c.h.bf16 %v18
  %v59 = vunpack.c.l.bf16 %v19
  %v60 = vunpack.c.h.bf16 %v19
  %v61 = vunpack.c.l.bf16 %v20
  %v62 = vunpack.c.h.bf16 %v20
  %v63 = vunpack.c.l.bf16 %v21
  %v64 = vunpack.c.h.bf16 %v21
  %v65 = vunpack.c.l.bf16 %v22
  %v66 = vunpack.c.h.bf16 %v22
  %v67 = vunpack.c.l.bf16 %v23
  %v68 = vunpack.c.h.bf16 %v23
  %v69 = vunpack.c.l.bf16 %v24
  %v70 = vunpack.c.h.bf16 %v24
  %v71 = vunpack.c.l.bf16 %v25
  %v72 = vunpack.c.h.bf16 %v25
  %v73 = vunpack.c.l.bf16 %v26
  %v74 = vunpack.c.h.bf16 %v26
  %v75 = vunpack.c.l.bf16 %v27
  %v76 = vunpack.c.h.bf16 %v27
  %v77 = vunpack.c.l.bf16 %v28
  %v78 = vunpack.c.h.bf16 %v28
  %v79 = vunpack.c.l.bf16 %v29
  %v80 = vunpack.c.h.bf16 %v29
  %v81 = vunpack.c.l.bf16 %v30
  %v82 = vunpack.c.h.bf16 %v30
  %v83 = vunpack.c.l.bf16 %v31
  %v84 = vunpack.c.h.bf16 %v31
  %v85 = vunpack.c.l.bf16 %v32
  %v86 = vunpack.c.h.bf16 %v32
  %v87 = vunpack.c.l.bf16 %v33
  %v88 = vunpack.c.h.bf16 %v33
  %v89 = vunpack.c.l.bf16 %v34
  %v90 = vunpack.c.h.bf16 %v34
  %v91 = vunpack.c.l.bf16 %v35
  %v92 = vunpack.c.h.bf16 %v35
  %v93 = vunpack.c.l.bf16 %v36
  %v94 = vunpack.c.h.bf16 %v36
  %v95 = vunpack.c.l.bf16 %v37
  %v96 = vunpack.c.h.bf16 %v37
  %v97 = vunpack.c.l.bf16 %v38
  %v98 = vunpack.c.h.bf16 %v38
  %v99 = vunpack.c.l.bf16 %v39
  %v100 = vunpack.c.h.bf16 %v39
  %v101 = vunpack.c.l.bf16 %v40
  %v102 = vunpack.c.h.bf16 %v40
  %v103 = vunpack.c.l.bf16 %v41
  %v104 = vunpack.c.h.bf16 %v41
  %v105 = vunpack.c.l.bf16 %v42
  %v106 = vunpack.c.h.bf16 %v42
  %v107 = vld [vmem:[%s1] sm:$0xff]
  %v108 = vld [vmem:[%s1 + $0x8] sm:$0xff]
  %v109 = vld [vmem:[%s1 + $0x10] sm:$0xff]
  %v110 = vld [vmem:[%s1 + $0x18] sm:$0xff]
  %v111 = vld [vmem:[%s1 + $0x20] sm:$0xff]
  %v112 = vld [vmem:[%s1 + $0x28] sm:$0xff]
  %v113 = vld [vmem:[%s1 + $0x30] sm:$0xff]
  %v114 = vld [vmem:[%s1 + $0x38] sm:$0xff]
  %v115 = vld [vmem:[%s1 + $0x40] sm:$0xff]
  %v116 = vld [vmem:[%s1 + $0x48] sm:$0xff]
  %v117 = vld [vmem:[%s1 + $0x50] sm:$0xff]
  %v118 = vld [vmem:[%s1 + $0x58] sm:$0xff]
  %v119 = vld [vmem:[%s1 + $0x60] sm:$0xff]
  %v120 = vld [vmem:[%s1 + $0x68] sm:$0xff]
  %v121 = vld [vmem:[%s1 + $0x70] sm:$0xff]
  %v122 = vld [vmem:[%s1 + $0x78] sm:$0xff]
  %124 = vset.pattern.permute.xlu0 0
  %125 = vperm.xlu0 %124, %v107
  %v126 = vpop.permute.xlu0 %125
  %129 = vset.pattern.permute.xlu0 0
  %130 = vperm.xlu0 %129, %v108
  %v131 = vpop.permute.xlu0 %130
  %134 = vset.pattern.permute.xlu0 0
  %135 = vperm.xlu0 %134, %v109
  %v136 = vpop.permute.xlu0 %135
  %139 = vset.pattern.permute.xlu0 0
  %140 = vperm.xlu0 %139, %v110
  %v141 = vpop.permute.xlu0 %140
  %144 = vset.pattern.permute.xlu0 0
  %145 = vperm.xlu0 %144, %v111
  %v146 = vpop.permute.xlu0 %145
  %149 = vset.pattern.permute.xlu0 0
  %150 = vperm.xlu0 %149, %v112
  %v151 = vpop.permute.xlu0 %150
  %154 = vset.pattern.permute.xlu0 0
  %155 = vperm.xlu0 %154, %v113
  %v156 = vpop.permute.xlu0 %155
  %159 = vset.pattern.permute.xlu0 0
  %160 = vperm.xlu0 %159, %v114
  %v161 = vpop.permute.xlu0 %160
  %164 = vset.pattern.permute.xlu0 0
  %165 = vperm.xlu0 %164, %v115
  %v166 = vpop.permute.xlu0 %165
  %169 = vset.pattern.permute.xlu0 0
  %170 = vperm.xlu0 %169, %v116
  %v171 = vpop.permute.xlu0 %170
  %174 = vset.pattern.permute.xlu0 0
  %175 = vperm.xlu0 %174, %v117
  %v176 = vpop.permute.xlu0 %175
  %179 = vset.pattern.permute.xlu0 0
  %180 = vperm.xlu0 %179, %v118
  %v181 = vpop.permute.xlu0 %180
  %184 = vset.pattern.permute.xlu0 0
  %185 = vperm.xlu0 %184, %v119
  %v186 = vpop.permute.xlu0 %185
  %189 = vset.pattern.permute.xlu0 0
  %190 = vperm.xlu0 %189, %v120
  %v191 = vpop.permute.xlu0 %190
  %194 = vset.pattern.permute.xlu0 0
  %195 = vperm.xlu0 %194, %v121
  %v196 = vpop.permute.xlu0 %195
  %199 = vset.pattern.permute.xlu0 0
  %200 = vperm.xlu0 %199, %v122
  %v201 = vpop.permute.xlu0 %200
  %v203 = vmul.f32 %v43, %v126
  %v204 = vmul.f32 %v44, %v126
  %v205 = vmul.f32 %v45, %v126
  %v206 = vmul.f32 %v46, %v126
  %v207 = vmul.f32 %v47, %v131
  %v208 = vmul.f32 %v48, %v131
  %v209 = vmul.f32 %v49, %v131
  %v210 = vmul.f32 %v50, %v131
  %v211 = vmul.f32 %v51, %v136
  %v212 = vmul.f32 %v52, %v136
  %v213 = vmul.f32 %v53, %v136
  %v214 = vmul.f32 %v54, %v136
  %v215 = vmul.f32 %v55, %v141
  %v216 = vmul.f32 %v56, %v141
  %v217 = vmul.f32 %v57, %v141
  %v218 = vmul.f32 %v58, %v141
  %v219 = vmul.f32 %v59, %v146
  %v220 = vmul.f32 %v60, %v146
  %v221 = vmul.f32 %v61, %v146
  %v222 = vmul.f32 %v62, %v146
  %v223 = vmul.f32 %v63, %v151
  %v224 = vmul.f32 %v64, %v151
  %v225 = vmul.f32 %v65, %v151
  %v226 = vmul.f32 %v66, %v151
  %v227 = vmul.f32 %v67, %v156
  %v228 = vmul.f32 %v68, %v156
  %v229 = vmul.f32 %v69, %v156
  %v230 = vmul.f32 %v70, %v156
  %v231 = vmul.f32 %v71, %v161
  %v232 = vmul.f32 %v72, %v161
  %v233 = vmul.f32 %v73, %v161
  %v234 = vmul.f32 %v74, %v161
  %v235 = vmul.f32 %v75, %v166
  %v236 = vmul.f32 %v76, %v166
  %v237 = vmul.f32 %v77, %v166
  %v238 = vmul.f32 %v78, %v166
  %v239 = vmul.f32 %v79, %v171
  %v240 = vmul.f32 %v80, %v171
  %v241 = vmul.f32 %v81, %v171
  %v242 = vmul.f32 %v82, %v171
  %v243 = vmul.f32 %v83, %v176
  %v244 = vmul.f32 %v84, %v176
  %v245 = vmul.f32 %v85, %v176
  %v246 = vmul.f32 %v86, %v176
  %v247 = vmul.f32 %v87, %v181
  %v248 = vmul.f32 %v88, %v181
  %v249 = vmul.f32 %v89, %v181
  %v250 = vmul.f32 %v90, %v181
  %v251 = vmul.f32 %v91, %v186
  %v252 = vmul.f32 %v92, %v186
  %v253 = vmul.f32 %v93, %v186
  %v254 = vmul.f32 %v94, %v186
  %v255 = vmul.f32 %v95, %v191
  %v256 = vmul.f32 %v96, %v191
  %v257 = vmul.f32 %v97, %v191
  %v258 = vmul.f32 %v98, %v191
  %v259 = vmul.f32 %v99, %v196
  %v260 = vmul.f32 %v100, %v196
  %v261 = vmul.f32 %v101, %v196
  %v262 = vmul.f32 %v102, %v196
  %v263 = vmul.f32 %v103, %v201
  %v264 = vmul.f32 %v104, %v201
  %v265 = vmul.f32 %v105, %v201
  %v266 = vmul.f32 %v106, %v201
  %267 = vset.pattern.permute.xlu0 1
  %268 = vperm.xlu0 %267, %v107
  %v269 = vpop.permute.xlu0 %268
  %271 = vset.pattern.permute.xlu0 1
  %272 = vperm.xlu0 %271, %v108
  %v273 = vpop.permute.xlu0 %272
  %275 = vset.pattern.permute.xlu0 1
  %276 = vperm.xlu0 %275, %v109
  %v277 = vpop.permute.xlu0 %276
  %279 = vset.pattern.permute.xlu0 1
  %280 = vperm.xlu0 %279, %v110
  %v281 = vpop.permute.xlu0 %280
  %283 = vset.pattern.permute.xlu0 1
  %284 = vperm.xlu0 %283, %v111
  %v285 = vpop.permute.xlu0 %284
  %287 = vset.pattern.permute.xlu0 1
  %288 = vperm.xlu0 %287, %v112
  %v289 = vpop.permute.xlu0 %288
  %291 = vset.pattern.permute.xlu0 1
  %292 = vperm.xlu0 %291, %v113
  %v293 = vpop.permute.xlu0 %292
  %295 = vset.pattern.permute.xlu0 1
  %296 = vperm.xlu0 %295, %v114
  %v297 = vpop.permute.xlu0 %296
  %299 = vset.pattern.permute.xlu0 1
  %300 = vperm.xlu0 %299, %v115
  %v301 = vpop.permute.xlu0 %300
  %303 = vset.pattern.permute.xlu0 1
  %304 = vperm.xlu0 %303, %v116
  %v305 = vpop.permute.xlu0 %304
  %307 = vset.pattern.permute.xlu0 1
  %308 = vperm.xlu0 %307, %v117
  %v309 = vpop.permute.xlu0 %308
  %311 = vset.pattern.permute.xlu0 1
  %312 = vperm.xlu0 %311, %v118
  %v313 = vpop.permute.xlu0 %312
  %315 = vset.pattern.permute.xlu0 1
  %316 = vperm.xlu0 %315, %v119
  %v317 = vpop.permute.xlu0 %316
  %319 = vset.pattern.permute.xlu0 1
  %320 = vperm.xlu0 %319, %v120
  %v321 = vpop.permute.xlu0 %320
  %323 = vset.pattern.permute.xlu0 1
  %324 = vperm.xlu0 %323, %v121
  %v325 = vpop.permute.xlu0 %324
  %327 = vset.pattern.permute.xlu0 1
  %328 = vperm.xlu0 %327, %v122
  %v329 = vpop.permute.xlu0 %328
  %v331 = vadd.f32 %v203, %v269
  %v332 = vadd.f32 %v204, %v269
  %v333 = vadd.f32 %v205, %v269
  %v334 = vadd.f32 %v206, %v269
  %v335 = vadd.f32 %v207, %v273
  %v336 = vadd.f32 %v208, %v273
  %v337 = vadd.f32 %v209, %v273
  %v338 = vadd.f32 %v210, %v273
  %v339 = vadd.f32 %v211, %v277
  %v340 = vadd.f32 %v212, %v277
  %v341 = vadd.f32 %v213, %v277
  %v342 = vadd.f32 %v214, %v277
  %v343 = vadd.f32 %v215, %v281
  %v344 = vadd.f32 %v216, %v281
  %v345 = vadd.f32 %v217, %v281
  %v346 = vadd.f32 %v218, %v281
  %v347 = vadd.f32 %v219, %v285
  %v348 = vadd.f32 %v220, %v285
  %v349 = vadd.f32 %v221, %v285
  %v350 = vadd.f32 %v222, %v285
  %v351 = vadd.f32 %v223, %v289
  %v352 = vadd.f32 %v224, %v289
  %v353 = vadd.f32 %v225, %v289
  %v354 = vadd.f32 %v226, %v289
  %v355 = vadd.f32 %v227, %v293
  %v356 = vadd.f32 %v228, %v293
  %v357 = vadd.f32 %v229, %v293
  %v358 = vadd.f32 %v230, %v293
  %v359 = vadd.f32 %v231, %v297
  %v360 = vadd.f32 %v232, %v297
  %v361 = vadd.f32 %v233, %v297
  %v362 = vadd.f32 %v234, %v297
  %v363 = vadd.f32 %v235, %v301
  %v364 = vadd.f32 %v236, %v301
  %v365 = vadd.f32 %v237, %v301
  %v366 = vadd.f32 %v238, %v301
  %v367 = vadd.f32 %v239, %v305
  %v368 = vadd.f32 %v240, %v305
  %v369 = vadd.f32 %v241, %v305
  %v370 = vadd.f32 %v242, %v305
  %v371 = vadd.f32 %v243, %v309
  %v372 = vadd.f32 %v244, %v309
  %v373 = vadd.f32 %v245, %v309
  %v374 = vadd.f32 %v246, %v309
  %v375 = vadd.f32 %v247, %v313
  %v376 = vadd.f32 %v248, %v313
  %v377 = vadd.f32 %v249, %v313
  %v378 = vadd.f32 %v250, %v313
  %v379 = vadd.f32 %v251, %v317
  %v380 = vadd.f32 %v252, %v317
  %v381 = vadd.f32 %v253, %v317
  %v382 = vadd.f32 %v254, %v317
  %v383 = vadd.f32 %v255, %v321
  %v384 = vadd.f32 %v256, %v321
  %v385 = vadd.f32 %v257, %v321
  %v386 = vadd.f32 %v258, %v321
  %v387 = vadd.f32 %v259, %v325
  %v388 = vadd.f32 %v260, %v325
  %v389 = vadd.f32 %v261, %v325
  %v390 = vadd.f32 %v262, %v325
  %v391 = vadd.f32 %v263, %v329
  %v392 = vadd.f32 %v264, %v329
  %v393 = vadd.f32 %v265, %v329
  %v394 = vadd.f32 %v266, %v329
  %v395 = vxor.u32 %v331, 2147483648
  %v396 = vxor.u32 %v332, 2147483648
  %v397 = vxor.u32 %v333, 2147483648
  %v398 = vxor.u32 %v334, 2147483648
  %v399 = vxor.u32 %v335, 2147483648
  %v400 = vxor.u32 %v336, 2147483648
  %v401 = vxor.u32 %v337, 2147483648
  %v402 = vxor.u32 %v338, 2147483648
  %v403 = vxor.u32 %v339, 2147483648
  %v404 = vxor.u32 %v340, 2147483648
  %v405 = vxor.u32 %v341, 2147483648
  %v406 = vxor.u32 %v342, 2147483648
  %v407 = vxor.u32 %v343, 2147483648
  %v408 = vxor.u32 %v344, 2147483648
  %v409 = vxor.u32 %v345, 2147483648
  %v410 = vxor.u32 %v346, 2147483648
  %v411 = vxor.u32 %v347, 2147483648
  %v412 = vxor.u32 %v348, 2147483648
  %v413 = vxor.u32 %v349, 2147483648
  %v414 = vxor.u32 %v350, 2147483648
  %v415 = vxor.u32 %v351, 2147483648
  %v416 = vxor.u32 %v352, 2147483648
  %v417 = vxor.u32 %v353, 2147483648
  %v418 = vxor.u32 %v354, 2147483648
  %v419 = vxor.u32 %v355, 2147483648
  %v420 = vxor.u32 %v356, 2147483648
  %v421 = vxor.u32 %v357, 2147483648
  %v422 = vxor.u32 %v358, 2147483648
  %v423 = vxor.u32 %v359, 2147483648
  %v424 = vxor.u32 %v360, 2147483648
  %v425 = vxor.u32 %v361, 2147483648
  %v426 = vxor.u32 %v362, 2147483648
  %v427 = vxor.u32 %v363, 2147483648
  %v428 = vxor.u32 %v364, 2147483648
  %v429 = vxor.u32 %v365, 2147483648
  %v430 = vxor.u32 %v366, 2147483648
  %v431 = vxor.u32 %v367, 2147483648
  %v432 = vxor.u32 %v368, 2147483648
  %v433 = vxor.u32 %v369, 2147483648
  %v434 = vxor.u32 %v370, 2147483648
  %v435 = vxor.u32 %v371, 2147483648
  %v436 = vxor.u32 %v372, 2147483648
  %v437 = vxor.u32 %v373, 2147483648
  %v438 = vxor.u32 %v374, 2147483648
  %v439 = vxor.u32 %v375, 2147483648
  %v440 = vxor.u32 %v376, 2147483648
  %v441 = vxor.u32 %v377, 2147483648
  %v442 = vxor.u32 %v378, 2147483648
  %v443 = vxor.u32 %v379, 2147483648
  %v444 = vxor.u32 %v380, 2147483648
  %v445 = vxor.u32 %v381, 2147483648
  %v446 = vxor.u32 %v382, 2147483648
  %v447 = vxor.u32 %v383, 2147483648
  %v448 = vxor.u32 %v384, 2147483648
  %v449 = vxor.u32 %v385, 2147483648
  %v450 = vxor.u32 %v386, 2147483648
  %v451 = vxor.u32 %v387, 2147483648
  %v452 = vxor.u32 %v388, 2147483648
  %v453 = vxor.u32 %v389, 2147483648
  %v454 = vxor.u32 %v390, 2147483648
  %v455 = vxor.u32 %v391, 2147483648
  %v456 = vxor.u32 %v392, 2147483648
  %v457 = vxor.u32 %v393, 2147483648
  %v458 = vxor.u32 %v394, 2147483648
  %v459 = vmul.f32 %v395, 1.442695
  %v460 = vpow.pop %v459
  %v461 = vmul.f32 %v396, 1.442695
  %v462 = vpow.pop %v461
  %v463 = vmul.f32 %v397, 1.442695
  %v464 = vpow.pop %v463
  %v465 = vmul.f32 %v398, 1.442695
  %v466 = vpow.pop %v465
  %v467 = vmul.f32 %v399, 1.442695
  %v468 = vpow.pop %v467
  %v469 = vmul.f32 %v400, 1.442695
  %v470 = vpow.pop %v469
  %v471 = vmul.f32 %v401, 1.442695
  %v472 = vpow.pop %v471
  %v473 = vmul.f32 %v402, 1.442695
  %v474 = vpow.pop %v473
  %v475 = vmul.f32 %v403, 1.442695
  %v476 = vpow.pop %v475
  %v477 = vmul.f32 %v404, 1.442695
  %v478 = vpow.pop %v477
  %v479 = vmul.f32 %v405, 1.442695
  %v480 = vpow.pop %v479
  %v481 = vmul.f32 %v406, 1.442695
  %v482 = vpow.pop %v481
  %v483 = vmul.f32 %v407, 1.442695
  %v484 = vpow.pop %v483
  %v485 = vmul.f32 %v408, 1.442695
  %v486 = vpow.pop %v485
  %v487 = vmul.f32 %v409, 1.442695
  %v488 = vpow.pop %v487
  %v489 = vmul.f32 %v410, 1.442695
  %v490 = vpow.pop %v489
  %v491 = vmul.f32 %v411, 1.442695
  %v492 = vpow.pop %v491
  %v493 = vmul.f32 %v412, 1.442695
  %v494 = vpow.pop %v493
  %v495 = vmul.f32 %v413, 1.442695
  %v496 = vpow.pop %v495
  %v497 = vmul.f32 %v414, 1.442695
  %v498 = vpow.pop %v497
  %v499 = vmul.f32 %v415, 1.442695
  %v500 = vpow.pop %v499
  %v501 = vmul.f32 %v416, 1.442695
  %v502 = vpow.pop %v501
  %v503 = vmul.f32 %v417, 1.442695
  %v504 = vpow.pop %v503
  %v505 = vmul.f32 %v418, 1.442695
  %v506 = vpow.pop %v505
  %v507 = vmul.f32 %v419, 1.442695
  %v508 = vpow.pop %v507
  %v509 = vmul.f32 %v420, 1.442695
  %v510 = vpow.pop %v509
  %v511 = vmul.f32 %v421, 1.442695
  %v512 = vpow.pop %v511
  %v513 = vmul.f32 %v422, 1.442695
  %v514 = vpow.pop %v513
  %v515 = vmul.f32 %v423, 1.442695
  %v516 = vpow.pop %v515
  %v517 = vmul.f32 %v424, 1.442695
  %v518 = vpow.pop %v517
  %v519 = vmul.f32 %v425, 1.442695
  %v520 = vpow.pop %v519
  %v521 = vmul.f32 %v426, 1.442695
  %v522 = vpow.pop %v521
  %v523 = vmul.f32 %v427, 1.442695
  %v524 = vpow.pop %v523
  %v525 = vmul.f32 %v428, 1.442695
  %v526 = vpow.pop %v525
  %v527 = vmul.f32 %v429, 1.442695
  %v528 = vpow.pop %v527
  %v529 = vmul.f32 %v430, 1.442695
  %v530 = vpow.pop %v529
  %v531 = vmul.f32 %v431, 1.442695
  %v532 = vpow.pop %v531
  %v533 = vmul.f32 %v432, 1.442695
  %v534 = vpow.pop %v533
  %v535 = vmul.f32 %v433, 1.442695
  %v536 = vpow.pop %v535
  %v537 = vmul.f32 %v434, 1.442695
  %v538 = vpow.pop %v537
  %v539 = vmul.f32 %v435, 1.442695
  %v540 = vpow.pop %v539
  %v541 = vmul.f32 %v436, 1.442695
  %v542 = vpow.pop %v541
  %v543 = vmul.f32 %v437, 1.442695
  %v544 = vpow.pop %v543
  %v545 = vmul.f32 %v438, 1.442695
  %v546 = vpow.pop %v545
  %v547 = vmul.f32 %v439, 1.442695
  %v548 = vpow.pop %v547
  %v549 = vmul.f32 %v440, 1.442695
  %v550 = vpow.pop %v549
  %v551 = vmul.f32 %v441, 1.442695
  %v552 = vpow.pop %v551
  %v553 = vmul.f32 %v442, 1.442695
  %v554 = vpow.pop %v553
  %v555 = vmul.f32 %v443, 1.442695
  %v556 = vpow.pop %v555
  %v557 = vmul.f32 %v444, 1.442695
  %v558 = vpow.pop %v557
  %v559 = vmul.f32 %v445, 1.442695
  %v560 = vpow.pop %v559
  %v561 = vmul.f32 %v446, 1.442695
  %v562 = vpow.pop %v561
  %v563 = vmul.f32 %v447, 1.442695
  %v564 = vpow.pop %v563
  %v565 = vmul.f32 %v448, 1.442695
  %v566 = vpow.pop %v565
  %v567 = vmul.f32 %v449, 1.442695
  %v568 = vpow.pop %v567
  %v569 = vmul.f32 %v450, 1.442695
  %v570 = vpow.pop %v569
  %v571 = vmul.f32 %v451, 1.442695
  %v572 = vpow.pop %v571
  %v573 = vmul.f32 %v452, 1.442695
  %v574 = vpow.pop %v573
  %v575 = vmul.f32 %v453, 1.442695
  %v576 = vpow.pop %v575
  %v577 = vmul.f32 %v454, 1.442695
  %v578 = vpow.pop %v577
  %v579 = vmul.f32 %v455, 1.442695
  %v580 = vpow.pop %v579
  %v581 = vmul.f32 %v456, 1.442695
  %v582 = vpow.pop %v581
  %v583 = vmul.f32 %v457, 1.442695
  %v584 = vpow.pop %v583
  %v585 = vmul.f32 %v458, 1.442695
  %v586 = vpow.pop %v585
  %v587 = vadd.f32 %v460, 1.0
  %v588 = vadd.f32 %v462, 1.0
  %v589 = vadd.f32 %v464, 1.0
  %v590 = vadd.f32 %v466, 1.0
  %v591 = vadd.f32 %v468, 1.0
  %v592 = vadd.f32 %v470, 1.0
  %v593 = vadd.f32 %v472, 1.0
  %v594 = vadd.f32 %v474, 1.0
  %v595 = vadd.f32 %v476, 1.0
  %v596 = vadd.f32 %v478, 1.0
  %v597 = vadd.f32 %v480, 1.0
  %v598 = vadd.f32 %v482, 1.0
  %v599 = vadd.f32 %v484, 1.0
  %v600 = vadd.f32 %v486, 1.0
  %v601 = vadd.f32 %v488, 1.0
  %v602 = vadd.f32 %v490, 1.0
  %v603 = vadd.f32 %v492, 1.0
  %v604 = vadd.f32 %v494, 1.0
  %v605 = vadd.f32 %v496, 1.0
  %v606 = vadd.f32 %v498, 1.0
  %v607 = vadd.f32 %v500, 1.0
  %v608 = vadd.f32 %v502, 1.0
  %v609 = vadd.f32 %v504, 1.0
  %v610 = vadd.f32 %v506, 1.0
  %v611 = vadd.f32 %v508, 1.0
  %v612 = vadd.f32 %v510, 1.0
  %v613 = vadd.f32 %v512, 1.0
  %v614 = vadd.f32 %v514, 1.0
  %v615 = vadd.f32 %v516, 1.0
  %v616 = vadd.f32 %v518, 1.0
  %v617 = vadd.f32 %v520, 1.0
  %v618 = vadd.f32 %v522, 1.0
  %v619 = vadd.f32 %v524, 1.0
  %v620 = vadd.f32 %v526, 1.0
  %v621 = vadd.f32 %v528, 1.0
  %v622 = vadd.f32 %v530, 1.0
  %v623 = vadd.f32 %v532, 1.0
  %v624 = vadd.f32 %v534, 1.0
  %v625 = vadd.f32 %v536, 1.0
  %v626 = vadd.f32 %v538, 1.0
  %v627 = vadd.f32 %v540, 1.0
  %v628 = vadd.f32 %v542, 1.0
  %v629 = vadd.f32 %v544, 1.0
  %v630 = vadd.f32 %v546, 1.0
  %v631 = vadd.f32 %v548, 1.0
  %v632 = vadd.f32 %v550, 1.0
  %v633 = vadd.f32 %v552, 1.0
  %v634 = vadd.f32 %v554, 1.0
  %v635 = vadd.f32 %v556, 1.0
  %v636 = vadd.f32 %v558, 1.0
  %v637 = vadd.f32 %v560, 1.0
  %v638 = vadd.f32 %v562, 1.0
  %v639 = vadd.f32 %v564, 1.0
  %v640 = vadd.f32 %v566, 1.0
  %v641 = vadd.f32 %v568, 1.0
  %v642 = vadd.f32 %v570, 1.0
  %v643 = vadd.f32 %v572, 1.0
  %v644 = vadd.f32 %v574, 1.0
  %v645 = vadd.f32 %v576, 1.0
  %v646 = vadd.f32 %v578, 1.0
  %v647 = vadd.f32 %v580, 1.0
  %v648 = vadd.f32 %v582, 1.0
  %v649 = vadd.f32 %v584, 1.0
  %v650 = vadd.f32 %v586, 1.0
  %v651 = vrcp.pop %v587
  %v652 = vmul.f32 1.0, %v651
  %v653 = vrcp.pop %v588
  %v654 = vmul.f32 1.0, %v653
  %v655 = vrcp.pop %v589
  %v656 = vmul.f32 1.0, %v655
  %v657 = vrcp.pop %v590
  %v658 = vmul.f32 1.0, %v657
  %v659 = vrcp.pop %v591
  %v660 = vmul.f32 1.0, %v659
  %v661 = vrcp.pop %v592
  %v662 = vmul.f32 1.0, %v661
  %v663 = vrcp.pop %v593
  %v664 = vmul.f32 1.0, %v663
  %v665 = vrcp.pop %v594
  %v666 = vmul.f32 1.0, %v665
  %v667 = vrcp.pop %v595
  %v668 = vmul.f32 1.0, %v667
  %v669 = vrcp.pop %v596
  %v670 = vmul.f32 1.0, %v669
  %v671 = vrcp.pop %v597
  %v672 = vmul.f32 1.0, %v671
  %v673 = vrcp.pop %v598
  %v674 = vmul.f32 1.0, %v673
  %v675 = vrcp.pop %v599
  %v676 = vmul.f32 1.0, %v675
  %v677 = vrcp.pop %v600
  %v678 = vmul.f32 1.0, %v677
  %v679 = vrcp.pop %v601
  %v680 = vmul.f32 1.0, %v679
  %v681 = vrcp.pop %v602
  %v682 = vmul.f32 1.0, %v681
  %v683 = vrcp.pop %v603
  %v684 = vmul.f32 1.0, %v683
  %v685 = vrcp.pop %v604
  %v686 = vmul.f32 1.0, %v685
  %v687 = vrcp.pop %v605
  %v688 = vmul.f32 1.0, %v687
  %v689 = vrcp.pop %v606
  %v690 = vmul.f32 1.0, %v689
  %v691 = vrcp.pop %v607
  %v692 = vmul.f32 1.0, %v691
  %v693 = vrcp.pop %v608
  %v694 = vmul.f32 1.0, %v693
  %v695 = vrcp.pop %v609
  %v696 = vmul.f32 1.0, %v695
  %v697 = vrcp.pop %v610
  %v698 = vmul.f32 1.0, %v697
  %v699 = vrcp.pop %v611
  %v700 = vmul.f32 1.0, %v699
  %v701 = vrcp.pop %v612
  %v702 = vmul.f32 1.0, %v701
  %v703 = vrcp.pop %v613
  %v704 = vmul.f32 1.0, %v703
  %v705 = vrcp.pop %v614
  %v706 = vmul.f32 1.0, %v705
  %v707 = vrcp.pop %v615
  %v708 = vmul.f32 1.0, %v707
  %v709 = vrcp.pop %v616
  %v710 = vmul.f32 1.0, %v709
  %v711 = vrcp.pop %v617
  %v712 = vmul.f32 1.0, %v711
  %v713 = vrcp.pop %v618
  %v714 = vmul.f32 1.0, %v713
  %v715 = vrcp.pop %v619
  %v716 = vmul.f32 1.0, %v715
  %v717 = vrcp.pop %v620
  %v718 = vmul.f32 1.0, %v717
  %v719 = vrcp.pop %v621
  %v720 = vmul.f32 1.0, %v719
  %v721 = vrcp.pop %v622
  %v722 = vmul.f32 1.0, %v721
  %v723 = vrcp.pop %v623
  %v724 = vmul.f32 1.0, %v723
  %v725 = vrcp.pop %v624
  %v726 = vmul.f32 1.0, %v725
  %v727 = vrcp.pop %v625
  %v728 = vmul.f32 1.0, %v727
  %v729 = vrcp.pop %v626
  %v730 = vmul.f32 1.0, %v729
  %v731 = vrcp.pop %v627
  %v732 = vmul.f32 1.0, %v731
  %v733 = vrcp.pop %v628
  %v734 = vmul.f32 1.0, %v733
  %v735 = vrcp.pop %v629
  %v736 = vmul.f32 1.0, %v735
  %v737 = vrcp.pop %v630
  %v738 = vmul.f32 1.0, %v737
  %v739 = vrcp.pop %v631
  %v740 = vmul.f32 1.0, %v739
  %v741 = vrcp.pop %v632
  %v742 = vmul.f32 1.0, %v741
  %v743 = vrcp.pop %v633
  %v744 = vmul.f32 1.0, %v743
  %v745 = vrcp.pop %v634
  %v746 = vmul.f32 1.0, %v745
  %v747 = vrcp.pop %v635
  %v748 = vmul.f32 1.0, %v747
  %v749 = vrcp.pop %v636
  %v750 = vmul.f32 1.0, %v749
  %v751 = vrcp.pop %v637
  %v752 = vmul.f32 1.0, %v751
  %v753 = vrcp.pop %v638
  %v754 = vmul.f32 1.0, %v753
  %v755 = vrcp.pop %v639
  %v756 = vmul.f32 1.0, %v755
  %v757 = vrcp.pop %v640
  %v758 = vmul.f32 1.0, %v757
  %v759 = vrcp.pop %v641
  %v760 = vmul.f32 1.0, %v759
  %v761 = vrcp.pop %v642
  %v762 = vmul.f32 1.0, %v761
  %v763 = vrcp.pop %v643
  %v764 = vmul.f32 1.0, %v763
  %v765 = vrcp.pop %v644
  %v766 = vmul.f32 1.0, %v765
  %v767 = vrcp.pop %v645
  %v768 = vmul.f32 1.0, %v767
  %v769 = vrcp.pop %v646
  %v770 = vmul.f32 1.0, %v769
  %v771 = vrcp.pop %v647
  %v772 = vmul.f32 1.0, %v771
  %v773 = vrcp.pop %v648
  %v774 = vmul.f32 1.0, %v773
  %v775 = vrcp.pop %v649
  %v776 = vmul.f32 1.0, %v775
  %v777 = vrcp.pop %v650
  %v778 = vmul.f32 1.0, %v777
  %v779 = vmul.f32 %v331, %v652
  %v780 = vmul.f32 %v332, %v654
  %v781 = vmul.f32 %v333, %v656
  %v782 = vmul.f32 %v334, %v658
  %v783 = vmul.f32 %v335, %v660
  %v784 = vmul.f32 %v336, %v662
  %v785 = vmul.f32 %v337, %v664
  %v786 = vmul.f32 %v338, %v666
  %v787 = vmul.f32 %v339, %v668
  %v788 = vmul.f32 %v340, %v670
  %v789 = vmul.f32 %v341, %v672
  %v790 = vmul.f32 %v342, %v674
  %v791 = vmul.f32 %v343, %v676
  %v792 = vmul.f32 %v344, %v678
  %v793 = vmul.f32 %v345, %v680
  %v794 = vmul.f32 %v346, %v682
  %v795 = vmul.f32 %v347, %v684
  %v796 = vmul.f32 %v348, %v686
  %v797 = vmul.f32 %v349, %v688
  %v798 = vmul.f32 %v350, %v690
  %v799 = vmul.f32 %v351, %v692
  %v800 = vmul.f32 %v352, %v694
  %v801 = vmul.f32 %v353, %v696
  %v802 = vmul.f32 %v354, %v698
  %v803 = vmul.f32 %v355, %v700
  %v804 = vmul.f32 %v356, %v702
  %v805 = vmul.f32 %v357, %v704
  %v806 = vmul.f32 %v358, %v706
  %v807 = vmul.f32 %v359, %v708
  %v808 = vmul.f32 %v360, %v710
  %v809 = vmul.f32 %v361, %v712
  %v810 = vmul.f32 %v362, %v714
  %v811 = vmul.f32 %v363, %v716
  %v812 = vmul.f32 %v364, %v718
  %v813 = vmul.f32 %v365, %v720
  %v814 = vmul.f32 %v366, %v722
  %v815 = vmul.f32 %v367, %v724
  %v816 = vmul.f32 %v368, %v726
  %v817 = vmul.f32 %v369, %v728
  %v818 = vmul.f32 %v370, %v730
  %v819 = vmul.f32 %v371, %v732
  %v820 = vmul.f32 %v372, %v734
  %v821 = vmul.f32 %v373, %v736
  %v822 = vmul.f32 %v374, %v738
  %v823 = vmul.f32 %v375, %v740
  %v824 = vmul.f32 %v376, %v742
  %v825 = vmul.f32 %v377, %v744
  %v826 = vmul.f32 %v378, %v746
  %v827 = vmul.f32 %v379, %v748
  %v828 = vmul.f32 %v380, %v750
  %v829 = vmul.f32 %v381, %v752
  %v830 = vmul.f32 %v382, %v754
  %v831 = vmul.f32 %v383, %v756
  %v832 = vmul.f32 %v384, %v758
  %v833 = vmul.f32 %v385, %v760
  %v834 = vmul.f32 %v386, %v762
  %v835 = vmul.f32 %v387, %v764
  %v836 = vmul.f32 %v388, %v766
  %v837 = vmul.f32 %v389, %v768
  %v838 = vmul.f32 %v390, %v770
  %v839 = vmul.f32 %v391, %v772
  %v840 = vmul.f32 %v392, %v774
  %v841 = vmul.f32 %v393, %v776
  %v842 = vmul.f32 %v394, %v778
  %843 = vst [vmem:[%s2] sm:$0xff] %v779
  %844 = vst [vmem:[%s2 + $0x8] sm:$0xff] %v780
  %845 = vst [vmem:[%s2 + $0x10] sm:$0xff] %v781
  %846 = vst [vmem:[%s2 + $0x18] sm:$0xff] %v782
  %847 = vst [vmem:[%s2 + $0x20] sm:$0xff] %v783
  %848 = vst [vmem:[%s2 + $0x28] sm:$0xff] %v784
  %849 = vst [vmem:[%s2 + $0x30] sm:$0xff] %v785
  %850 = vst [vmem:[%s2 + $0x38] sm:$0xff] %v786
  %851 = vst [vmem:[%s2 + $0x40] sm:$0xff] %v787
  %852 = vst [vmem:[%s2 + $0x48] sm:$0xff] %v788
  %853 = vst [vmem:[%s2 + $0x50] sm:$0xff] %v789
  %854 = vst [vmem:[%s2 + $0x58] sm:$0xff] %v790
  %855 = vst [vmem:[%s2 + $0x60] sm:$0xff] %v791
  %856 = vst [vmem:[%s2 + $0x68] sm:$0xff] %v792
  %857 = vst [vmem:[%s2 + $0x70] sm:$0xff] %v793
  %858 = vst [vmem:[%s2 + $0x78] sm:$0xff] %v794
  %859 = vst [vmem:[%s2 + $0x80] sm:$0xff] %v795
  %860 = vst [vmem:[%s2 + $0x88] sm:$0xff] %v796
  %861 = vst [vmem:[%s2 + $0x90] sm:$0xff] %v797
  %862 = vst [vmem:[%s2 + $0x98] sm:$0xff] %v798
  %863 = vst [vmem:[%s2 + $0xa0] sm:$0xff] %v799
  %864 = vst [vmem:[%s2 + $0xa8] sm:$0xff] %v800
  %865 = vst [vmem:[%s2 + $0xb0] sm:$0xff] %v801
  %866 = vst [vmem:[%s2 + $0xb8] sm:$0xff] %v802
  %867 = vst [vmem:[%s2 + $0xc0] sm:$0xff] %v803
  %868 = vst [vmem:[%s2 + $0xc8] sm:$0xff] %v804
  %869 = vst [vmem:[%s2 + $0xd0] sm:$0xff] %v805
  %870 = vst [vmem:[%s2 + $0xd8] sm:$0xff] %v806
  %871 = vst [vmem:[%s2 + $0xe0] sm:$0xff] %v807
  %872 = vst [vmem:[%s2 + $0xe8] sm:$0xff] %v808
  %873 = vst [vmem:[%s2 + $0xf0] sm:$0xff] %v809
  %874 = vst [vmem:[%s2 + $0xf8] sm:$0xff] %v810
  %875 = vst [vmem:[%s2 + $0x100] sm:$0xff] %v811
  %876 = vst [vmem:[%s2 + $0x108] sm:$0xff] %v812
  %877 = vst [vmem:[%s2 + $0x110] sm:$0xff] %v813
  %878 = vst [vmem:[%s2 + $0x118] sm:$0xff] %v814
  %879 = vst [vmem:[%s2 + $0x120] sm:$0xff] %v815
  %880 = vst [vmem:[%s2 + $0x128] sm:$0xff] %v816
  %881 = vst [vmem:[%s2 + $0x130] sm:$0xff] %v817
  %882 = vst [vmem:[%s2 + $0x138] sm:$0xff] %v818
  %883 = vst [vmem:[%s2 + $0x140] sm:$0xff] %v819
  %884 = vst [vmem:[%s2 + $0x148] sm:$0xff] %v820
  %885 = vst [vmem:[%s2 + $0x150] sm:$0xff] %v821
  %886 = vst [vmem:[%s2 + $0x158] sm:$0xff] %v822
  %887 = vst [vmem:[%s2 + $0x160] sm:$0xff] %v823
  %888 = vst [vmem:[%s2 + $0x168] sm:$0xff] %v824
  %889 = vst [vmem:[%s2 + $0x170] sm:$0xff] %v825
  %890 = vst [vmem:[%s2 + $0x178] sm:$0xff] %v826
  %891 = vst [vmem:[%s2 + $0x180] sm:$0xff] %v827
  %892 = vst [vmem:[%s2 + $0x188] sm:$0xff] %v828
  %893 = vst [vmem:[%s2 + $0x190] sm:$0xff] %v829
  %894 = vst [vmem:[%s2 + $0x198] sm:$0xff] %v830
  %895 = vst [vmem:[%s2 + $0x1a0] sm:$0xff] %v831
  %896 = vst [vmem:[%s2 + $0x1a8] sm:$0xff] %v832
  %897 = vst [vmem:[%s2 + $0x1b0] sm:$0xff] %v833
  %898 = vst [vmem:[%s2 + $0x1b8] sm:$0xff] %v834
  %899 = vst [vmem:[%s2 + $0x1c0] sm:$0xff] %v835
  %900 = vst [vmem:[%s2 + $0x1c8] sm:$0xff] %v836
  %901 = vst [vmem:[%s2 + $0x1d0] sm:$0xff] %v837
  %902 = vst [vmem:[%s2 + $0x1d8] sm:$0xff] %v838
  %903 = vst [vmem:[%s2 + $0x1e0] sm:$0xff] %v839
  %904 = vst [vmem:[%s2 + $0x1e8] sm:$0xff] %v840
  %905 = vst [vmem:[%s2 + $0x1f0] sm:$0xff] %v841
  %906 = vst [vmem:[%s2 + $0x1f8] sm:$0xff] %v842
  // Predicated region
  $region10: #{conv_bn_silu.3} parent=0 // pred_check
    _
  $region11: #{conv_bn_silu.3} parent=0 // pred_check_branch
    %908 = sbr.rel (0) target = $region13
  $region12: #{conv_bn_silu.3} parent=0 // pred_region
    _
  $region13: #{conv_bn_silu.3} parent=0 // pred_fallthru
    _
  // Predicated region
  $region14: #{conv_bn_silu.3} parent=0 // pred_check
    _
  $region15: #{conv_bn_silu.3} parent=0 // pred_check_branch
    %910 = sbr.rel (0) target = $region17
  $region16: #{conv_bn_silu.3} parent=0 // pred_region
    _
  $region17: #{conv_bn_silu.3} parent=0 // pred_fallthru
    _

</llo_original>
